<compile_context>
chip_gen: v5e
topology: v5e:2x2
jax: 0.10.0
libtpu: 0.0.40
codegen_flags: <defaults>
</compile_context>

<pallas_src>
import math
import functools

import jax
import jax.numpy as jnp
from jax.experimental import pallas as pl
from jax.experimental.pallas import tpu as pltpu

# ---------------- configuration (small, consistent with the module) ----------------
N_CLASSES = 4
EMB_SIZE = 256                    # hard-coded emb_sizes = [256, 256, 256, 256]
EMB_TOTAL = N_CLASSES * EMB_SIZE  # 1024 -> in_linear input
HIDDEN = 32                       # bertConfig.hidden_size (small for the demo)
NUM_HEADS = 2
HEAD_DIM = HIDDEN // NUM_HEADS    # 16
INTERMEDIATE = 64                 # bertConfig.intermediate_size
SPLIT_LAYER = 2
LN_EPS = 1e-12                    # HF BERT LayerNorm eps
MAX_POS = 512


# ---------------------------- in-kernel math helpers --------------------------------
def _layer_norm(x, gamma, beta, eps=LN_EPS):
    mean = jnp.mean(x, axis=-1, keepdims=True)
    var = jnp.mean((x - mean) * (x - mean), axis=-1, keepdims=True)
    return (x - mean) * jax.lax.rsqrt(var + eps) * gamma + beta


def _gelu(x):
    # tanh-form GELU: runs on the EUP (tanh slot) instead of a VALU erf polynomial.
    c = math.sqrt(2.0 / math.pi)
    return 0.5 * x * (1.0 + jnp.tanh(c * (x + 0.044715 * x * x * x)))


def _softmax(scores):
    # exp on EUP, divide replaced by EUP approx reciprocal.
    scores = scores - jnp.max(scores, axis=-1, keepdims=True)
    e = jnp.exp(scores)
    return e * pl.reciprocal(jnp.sum(e, axis=-1, keepdims=True), approx=True)


# --------------------------- fused front kernel --------------------------------------
def _fused_front_kernel(emb_ref, addvec_ref, emb_ln_ref,
                        wqkv_ref, bqkv_ref, wo_ref, vecs_ref,
                        wi_ref, wo2_ref, bi_ref, out_ref,
                        *, num_heads):
    # One grid step == one batch element: emb_ref / addvec_ref / out_ref are (S, H).
    H = wo_ref.shape[-1]
    dh = H // num_heads
    num_layers = wqkv_ref.shape[0]

    # ---- embedding add (pos/type/in_b pre-summed, broadcast over rows) + LayerNorm ----
    emb_ln = emb_ln_ref[...]                                      # (2, H): gamma, beta
    x = _layer_norm(emb_ref[...] + addvec_ref[...],
                    emb_ln[0:1, :], emb_ln[1:2, :])               # (S, H) f32

    # ---- `split_layer` BERT encoder layers, all activations VMEM-resident ----
    for l in range(num_layers):
        wqkv = wqkv_ref[l]        # (H, 3H)  bf16  [Q(scaled) | K | V] along lanes
        bqkv = bqkv_ref[l]        # (1, 3H)  f32
        wo = wo_ref[l]            # (H, H)   bf16
        vecs = vecs_ref[l]        # (6, H)   f32: bo, ln1_g, ln1_b, bo2, ln2_g, ln2_b
        wi = wi_ref[l]            # (H, I)   bf16
        wo2 = wo2_ref[l]          # (I, H)   bf16
        bi = bi_ref[l]            # (1, I)   f32

        xb = x.astype(jnp.bfloat16)

        # Fused QKV projection: one MXU push with a 96-lane output.
        qkv = jnp.dot(xb, wqkv, preferred_element_type=jnp.float32) + bqkv   # (S, 3H)

        # Per-head attention (static unroll over the 2 heads, 16-lane static slices).
        ctx_heads = []
        for hi in range(num_heads):
            q = qkv[:, hi * dh:(hi + 1) * dh].astype(jnp.bfloat16)           # scale folded in
            k = qkv[:, H + hi * dh:H + (hi + 1) * dh].astype(jnp.bfloat16)
            v = qkv[:, 2 * H + hi * dh:2 * H + (hi + 1) * dh].astype(jnp.bfloat16)
            scores = jax.lax.dot_general(q, k, (((1,), (1,)), ((), ())),
                                         preferred_element_type=jnp.float32)  # (S, S)
            probs = _softmax(scores)                                           # f32
            ctx_heads.append(jnp.dot(probs.astype(jnp.bfloat16), v,
                                     preferred_element_type=jnp.float32))      # (S, dh)

        # Merge heads into one (S, H) tile, single (H, H) output projection.
        ctx = jnp.concatenate(ctx_heads, axis=-1).astype(jnp.bfloat16)         # (S, H)
        attn = jnp.dot(ctx, wo, preferred_element_type=jnp.float32) + vecs[0:1, :]
        h1 = _layer_norm(attn + x, vecs[1:2, :], vecs[2:3, :])                 # add & LN

        # FFN
        h1b = h1.astype(jnp.bfloat16)
        ff = _gelu(jnp.dot(h1b, wi, preferred_element_type=jnp.float32) + bi)  # (S, I)
        ffo = jnp.dot(ff.astype(jnp.bfloat16), wo2,
                      preferred_element_type=jnp.float32) + vecs[3:4, :]       # (S, H)
        x = _layer_norm(ffo + h1, vecs[4:5, :], vecs[5:6, :])                  # add & LN

    out_ref[...] = x


# --------------------------------- parameters ---------------------------------------
def init_params(key, n_tokens):
    keys = iter(jax.random.split(key, 128))

    def nrm(shape, scale=0.02):
        return scale * jax.random.normal(next(keys), shape, dtype=jnp.float32)

    ones = lambda s: jnp.ones(s, jnp.float32)
    zeros = lambda s: jnp.zeros(s, jnp.float32)

    p = {
        "word_emb": [nrm((n, EMB_SIZE)) for n in n_tokens],
        "in_w": nrm((EMB_TOTAL, HIDDEN)), "in_b": nrm((1, HIDDEN)),
        "pos_emb": nrm((MAX_POS, HIDDEN)), "type_emb": nrm((2, HIDDEN)),
        "emb_ln_g": ones((1, HIDDEN)), "emb_ln_b": zeros((1, HIDDEN)),
        "layers": [],
    }
    for _ in range(SPLIT_LAYER):
        p["layers"].append(dict(
            wq=nrm((HIDDEN, HIDDEN)), bq=nrm((1, HIDDEN)),
            wk=nrm((HIDDEN, HIDDEN)), bk=nrm((1, HIDDEN)),
            wv=nrm((HIDDEN, HIDDEN)), bv=nrm((1, HIDDEN)),
            wo=nrm((HIDDEN, HIDDEN)), bo=nrm((1, HIDDEN)),
            ln1_g=ones((1, HIDDEN)), ln1_b=zeros((1, HIDDEN)),
            wi=nrm((HIDDEN, INTERMEDIATE)), bi=nrm((1, INTERMEDIATE)),
            wo2=nrm((INTERMEDIATE, HIDDEN)), bo2=nrm((1, HIDDEN)),
            ln2_g=ones((1, HIDDEN)), ln2_b=zeros((1, HIDDEN)),
        ))
    return p


def pack_params(params):
    """Pack per-layer tensors into a few stacked arrays; MXU weights cast to bf16.

    QKV weights/biases are fused along the output (lane) axis as [Q | K | V]; the
    1/sqrt(head_dim) attention scale is folded into the Q columns and Q bias.
    """
    layers = params["layers"]
    scale = 1.0 / math.sqrt(HEAD_DIM)

    wqkv = jnp.stack([jnp.concatenate([lp["wq"] * scale, lp["wk"], lp["wv"]], axis=1)
                      for lp in layers])                                 # (L, H, 3H)
    bqkv = jnp.stack([jnp.concatenate([lp["bq"] * scale, lp["bk"], lp["bv"]], axis=1)
                      for lp in layers])                                 # (L, 1, 3H)
    wo = jnp.stack([lp["wo"] for lp in layers])                          # (L, H, H)
    vecs = jnp.stack([
        jnp.concatenate([lp["bo"], lp["ln1_g"], lp["ln1_b"],
                         lp["bo2"], lp["ln2_g"], lp["ln2_b"]], axis=0)
        for lp in layers])                                               # (L, 6, H)
    wi = jnp.stack([lp["wi"] for lp in layers])                          # (L, H, I)
    wo2 = jnp.stack([lp["wo2"] for lp in layers])                        # (L, I, H)
    bi = jnp.stack([lp["bi"] for lp in layers])                          # (L, 1, I)

    return dict(
        emb_ln=jnp.concatenate([params["emb_ln_g"], params["emb_ln_b"]], axis=0),  # (2, H)
        wqkv=wqkv.astype(jnp.bfloat16),
        bqkv=bqkv,
        wo=wo.astype(jnp.bfloat16),
        vecs=vecs,
        wi=wi.astype(jnp.bfloat16),
        wo2=wo2.astype(jnp.bfloat16),
        bi=bi,
    )


# --------------------------------- forward ------------------------------------------
def midibert_front_forward(params, input_ids):
    B, S, _ = input_ids.shape
    assert S % 8 == 0, "pad S to a multiple of 8 (sublane alignment)"
    H, L = HIDDEN, SPLIT_LAYER

    # in_linear folded into the embedding tables (static, f32):
    #   emb[b,s,:] = sum_i (word_emb_i[id] * sqrt(256)) @ in_w[256i:256(i+1), :]
    # The data-dependent gather stays in the JAX wrapper (glue); the kernel input
    # is the tiny (B, S, 32) pre-LayerNorm hidden state instead of (B*S, 1024).
    emb = None
    for i in range(N_CLASSES):
        folded = (params["word_emb"][i] * math.sqrt(EMB_SIZE)) @ \
                 params["in_w"][i * EMB_SIZE:(i + 1) * EMB_SIZE, :]       # (n_i, H) f32
        part = jnp.take(folded, input_ids[..., i], axis=0)                # (B, S, H)
        emb = part if emb is None else emb + part

    # in_linear bias + position emb (ids 0..S-1) + token_type emb (row 0),
    # pre-summed once as (S, H); broadcast over batch happens inside the kernel.
    addvec = params["in_b"] + params["pos_emb"][:S, :] + params["type_emb"][0][None, :]

    pk = pack_params(params)
    kernel = functools.partial(_fused_front_kernel, num_heads=NUM_HEADS)

    full3 = lambda b: (0, 0, 0)   # whole-array weight blocks, resident across grid steps
    out = pl.pallas_call(
        kernel,
        grid=(B,),
        in_specs=[
            pl.BlockSpec((None, S, H), lambda b: (b, 0, 0)),      # emb      (per-batch tile)
            pl.BlockSpec((S, H), lambda b: (0, 0)),               # addvec
            pl.BlockSpec((2, H), lambda b: (0, 0)),               # emb LN gamma/beta
            pl.BlockSpec((L, H, 3 * H), full3),                   # fused QKV weights
            pl.BlockSpec((L, 1, 3 * H), full3),                   # fused QKV biases
            pl.BlockSpec((L, H, H), full3),                       # attention output proj
            pl.BlockSpec((L, 6, H), full3),                       # bo/ln1/bo2/ln2 vectors
            pl.BlockSpec((L, H, INTERMEDIATE), full3),            # FFN in
            pl.BlockSpec((L, INTERMEDIATE, H), full3),            # FFN out
            pl.BlockSpec((L, 1, INTERMEDIATE), full3),            # FFN bias
        ],
        out_specs=pl.BlockSpec((None, S, H), lambda b: (b, 0, 0)),
        out_shape=jax.ShapeDtypeStruct((B, S, H), jnp.float32),
        compiler_params=pltpu.CompilerParams(
            dimension_semantics=("parallel",)),                   # v7x: shard over both TCs
    )(emb, addvec, pk["emb_ln"], pk["wqkv"], pk["bqkv"], pk["wo"], pk["vecs"],
      pk["wi"], pk["wo2"], pk["bi"])

    return out                                                     # (B, S, H) last_hidden_state


# ----------------------------------- main --------------------------------------------
if __name__ == "__main__":
    key = jax.random.PRNGKey(0)
    k_params, k_inputs = jax.random.split(key)

    B, S = 2, 8
    n_tokens = [16, 20, 24, 28]           # len(e2w[key]) for Bar/Position/Pitch/Duration

    params = init_params(k_params, n_tokens)

    cols = []
    for i, n in enumerate(n_tokens):
        cols.append(jax.random.randint(jax.random.fold_in(k_inputs, i),
                                       (B, S, 1), 0, n, dtype=jnp.int32))
    input_ids = jnp.concatenate(cols, axis=-1)                           # (B, S, 4)

    out = midibert_front_forward(params, input_ids)
    out = jax.block_until_ready(out)

    assert out.shape == (B, S, HIDDEN), out.shape
    assert bool(jnp.all(jnp.isfinite(out)))
    print("KERNEL_OK")
</pallas_src>

<mosaic_0001>
module attributes {stable_mosaic.version = 11 : i64} {
  func.func @_fused_front_kernel(%arg0: i32, %arg1: memref<1x8x32xf32, #tpu.memory_space<vmem>>, %arg2: memref<8x32xf32, #tpu.memory_space<vmem>>, %arg3: memref<2x32xf32, #tpu.memory_space<vmem>>, %arg4: memref<2x32x96xbf16, #tpu.memory_space<vmem>>, %arg5: memref<2x1x96xf32, #tpu.memory_space<vmem>>, %arg6: memref<2x32x32xbf16, #tpu.memory_space<vmem>>, %arg7: memref<2x6x32xf32, #tpu.memory_space<vmem>>, %arg8: memref<2x32x64xbf16, #tpu.memory_space<vmem>>, %arg9: memref<2x64x32xbf16, #tpu.memory_space<vmem>>, %arg10: memref<2x1x64xf32, #tpu.memory_space<vmem>>, %arg11: memref<1x8x32xf32, #tpu.memory_space<vmem>>) attributes {dimension_semantics = [#tpu.dimension_semantics<parallel>], iteration_bounds = array<i64: 2>, scalar_prefetch = 0 : i64, scratch_operands = 0 : i64, tpu.core_type = #tpu.core_type<tc>, window_params = [{transform_indices = @transform_0, window_bounds = array<i64: 1, 8, 32>}, {pipeline_mode = #tpu.pipeline_mode<synchronous>, transform_indices = @transform_1, window_bounds = array<i64: 8, 32>}, {pipeline_mode = #tpu.pipeline_mode<synchronous>, transform_indices = @transform_2, window_bounds = array<i64: 2, 32>}, {pipeline_mode = #tpu.pipeline_mode<synchronous>, transform_indices = @transform_3, window_bounds = array<i64: 2, 32, 96>}, {pipeline_mode = #tpu.pipeline_mode<synchronous>, transform_indices = @transform_4, window_bounds = array<i64: 2, 1, 96>}, {pipeline_mode = #tpu.pipeline_mode<synchronous>, transform_indices = @transform_5, window_bounds = array<i64: 2, 32, 32>}, {pipeline_mode = #tpu.pipeline_mode<synchronous>, transform_indices = @transform_6, window_bounds = array<i64: 2, 6, 32>}, {pipeline_mode = #tpu.pipeline_mode<synchronous>, transform_indices = @transform_7, window_bounds = array<i64: 2, 32, 64>}, {pipeline_mode = #tpu.pipeline_mode<synchronous>, transform_indices = @transform_8, window_bounds = array<i64: 2, 64, 32>}, {pipeline_mode = #tpu.pipeline_mode<synchronous>, transform_indices = @transform_9, window_bounds = array<i64: 2, 1, 64>}, {transform_indices = @transform_10, window_bounds = array<i64: 1, 8, 32>}]} {
    %c0 = arith.constant 0 : index
    %c0_0 = arith.constant 0 : index
    %0 = vector.load %arg3[%c0, %c0_0] : memref<2x32xf32, #tpu.memory_space<vmem>>, vector<2x32xf32>
    %c0_1 = arith.constant 0 : index
    %c0_2 = arith.constant 0 : index
    %c0_3 = arith.constant 0 : index
    %1 = vector.load %arg1[%c0_1, %c0_2, %c0_3] : memref<1x8x32xf32, #tpu.memory_space<vmem>>, vector<1x8x32xf32>
    %2 = vector.shape_cast %1 : vector<1x8x32xf32> to vector<8x32xf32>
    %c0_4 = arith.constant 0 : index
    %c0_5 = arith.constant 0 : index
    %3 = vector.load %arg2[%c0_4, %c0_5] : memref<8x32xf32, #tpu.memory_space<vmem>>, vector<8x32xf32>
    %4 = arith.addf %2, %3 : vector<8x32xf32>
    %5 = vector.extract_strided_slice %0 {offsets = [0, 0], sizes = [1, 32], strides = [1, 1]} : vector<2x32xf32> to vector<1x32xf32>
    %6 = vector.extract_strided_slice %0 {offsets = [1, 0], sizes = [1, 32], strides = [1, 1]} : vector<2x32xf32> to vector<1x32xf32>
    %cst = arith.constant dense<0.000000e+00> : vector<8xf32>
    %7 = vector.multi_reduction <add>, %4, %cst [1] : vector<8x32xf32> to vector<8xf32>
    %8 = vector.shape_cast %7 : vector<8xf32> to vector<8x1xf32>
    %cst_6 = arith.constant 3.200000e+01 : f32
    %9 = vector.broadcast %cst_6 : f32 to vector<8x1xf32>
    %10 = arith.divf %8, %9 : vector<8x1xf32>
    %11 = vector.broadcast %10 : vector<8x1xf32> to vector<8x32xf32>
    %12 = arith.subf %4, %11 : vector<8x32xf32>
    %13 = vector.broadcast %10 : vector<8x1xf32> to vector<8x32xf32>
    %14 = arith.subf %4, %13 : vector<8x32xf32>
    %15 = arith.mulf %12, %14 : vector<8x32xf32>
    %cst_7 = arith.constant dense<0.000000e+00> : vector<8xf32>
    %16 = vector.multi_reduction <add>, %15, %cst_7 [1] : vector<8x32xf32> to vector<8xf32>
    %17 = vector.shape_cast %16 : vector<8xf32> to vector<8x1xf32>
    %cst_8 = arith.constant 3.200000e+01 : f32
    %18 = vector.broadcast %cst_8 : f32 to vector<8x1xf32>
    %19 = arith.divf %17, %18 : vector<8x1xf32>
    %20 = vector.broadcast %10 : vector<8x1xf32> to vector<8x32xf32>
    %21 = arith.subf %4, %20 : vector<8x32xf32>
    %cst_9 = arith.constant 9.99999996E-13 : f32
    %22 = vector.broadcast %cst_9 : f32 to vector<8x1xf32>
    %23 = arith.addf %19, %22 : vector<8x1xf32>
    %24 = math.rsqrt %23 : vector<8x1xf32>
    %25 = vector.broadcast %24 : vector<8x1xf32> to vector<8x32xf32>
    %26 = arith.mulf %21, %25 : vector<8x32xf32>
    %27 = vector.broadcast %5 : vector<1x32xf32> to vector<8x32xf32>
    %28 = arith.mulf %26, %27 : vector<8x32xf32>
    %29 = vector.broadcast %6 : vector<1x32xf32> to vector<8x32xf32>
    %30 = arith.addf %28, %29 : vector<8x32xf32>
    %c0_10 = arith.constant 0 : index
    %c0_11 = arith.constant 0 : index
    %c0_12 = arith.constant 0 : index
    %31 = vector.load %arg4[%c0_10, %c0_11, %c0_12] : memref<2x32x96xbf16, #tpu.memory_space<vmem>>, vector<1x32x96xbf16>
    %32 = vector.shape_cast %31 : vector<1x32x96xbf16> to vector<32x96xbf16>
    %c0_13 = arith.constant 0 : index
    %c0_14 = arith.constant 0 : index
    %c0_15 = arith.constant 0 : index
    %33 = vector.load %arg5[%c0_13, %c0_14, %c0_15] : memref<2x1x96xf32, #tpu.memory_space<vmem>>, vector<1x1x96xf32>
    %34 = vector.shape_cast %33 : vector<1x1x96xf32> to vector<1x96xf32>
    %c0_16 = arith.constant 0 : index
    %c0_17 = arith.constant 0 : index
    %c0_18 = arith.constant 0 : index
    %35 = vector.load %arg6[%c0_16, %c0_17, %c0_18] : memref<2x32x32xbf16, #tpu.memory_space<vmem>>, vector<1x32x32xbf16>
    %36 = vector.shape_cast %35 : vector<1x32x32xbf16> to vector<32x32xbf16>
    %c0_19 = arith.constant 0 : index
    %c0_20 = arith.constant 0 : index
    %c0_21 = arith.constant 0 : index
    %37 = vector.load %arg7[%c0_19, %c0_20, %c0_21] : memref<2x6x32xf32, #tpu.memory_space<vmem>>, vector<1x6x32xf32>
    %38 = vector.shape_cast %37 : vector<1x6x32xf32> to vector<6x32xf32>
    %c0_22 = arith.constant 0 : index
    %c0_23 = arith.constant 0 : index
    %c0_24 = arith.constant 0 : index
    %39 = vector.load %arg8[%c0_22, %c0_23, %c0_24] : memref<2x32x64xbf16, #tpu.memory_space<vmem>>, vector<1x32x64xbf16>
    %40 = vector.shape_cast %39 : vector<1x32x64xbf16> to vector<32x64xbf16>
    %c0_25 = arith.constant 0 : index
    %c0_26 = arith.constant 0 : index
    %c0_27 = arith.constant 0 : index
    %41 = vector.load %arg9[%c0_25, %c0_26, %c0_27] : memref<2x64x32xbf16, #tpu.memory_space<vmem>>, vector<1x64x32xbf16>
    %42 = vector.shape_cast %41 : vector<1x64x32xbf16> to vector<64x32xbf16>
    %c0_28 = arith.constant 0 : index
    %c0_29 = arith.constant 0 : index
    %c0_30 = arith.constant 0 : index
    %43 = vector.load %arg10[%c0_28, %c0_29, %c0_30] : memref<2x1x64xf32, #tpu.memory_space<vmem>>, vector<1x1x64xf32>
    %44 = vector.shape_cast %43 : vector<1x1x64xf32> to vector<1x64xf32>
    %45 = arith.truncf %30 : vector<8x32xf32> to vector<8x32xbf16>
    %cst_31 = arith.constant dense<0.000000e+00> : vector<8x96xf32>
    %46 = tpu.matmul %45, %32, %cst_31 {dimension_numbers = #tpu.dot_dimension_numbers<[1], [0], [0], [1], [0, 0, 1, 1], [], []>} : vector<8x32xbf16>, vector<32x96xbf16>, vector<8x96xf32> -> vector<8x96xf32>
    %47 = vector.broadcast %34 : vector<1x96xf32> to vector<8x96xf32>
    %48 = arith.addf %46, %47 : vector<8x96xf32>
    %49 = vector.extract_strided_slice %48 {offsets = [0, 0], sizes = [8, 16], strides = [1, 1]} : vector<8x96xf32> to vector<8x16xf32>
    %50 = arith.truncf %49 : vector<8x16xf32> to vector<8x16xbf16>
    %51 = vector.extract_strided_slice %48 {offsets = [0, 32], sizes = [8, 16], strides = [1, 1]} : vector<8x96xf32> to vector<8x16xf32>
    %52 = arith.truncf %51 : vector<8x16xf32> to vector<8x16xbf16>
    %53 = vector.extract_strided_slice %48 {offsets = [0, 64], sizes = [8, 16], strides = [1, 1]} : vector<8x96xf32> to vector<8x16xf32>
    %54 = arith.truncf %53 : vector<8x16xf32> to vector<8x16xbf16>
    %cst_32 = arith.constant dense<0.000000e+00> : vector<8x8xf32>
    %55 = tpu.matmul %50, %52, %cst_32 {dimension_numbers = #tpu.dot_dimension_numbers<[1], [1], [0], [0], [0, 0, 1, 0], [], []>} : vector<8x16xbf16>, vector<8x16xbf16>, vector<8x8xf32> -> vector<8x8xf32>
    %cst_33 = arith.constant dense<0xFF800000> : vector<8xf32>
    %56 = vector.multi_reduction <maximumf>, %55, %cst_33 [1] : vector<8x8xf32> to vector<8xf32>
    %57 = vector.shape_cast %56 : vector<8xf32> to vector<8x1xf32>
    %58 = vector.broadcast %57 : vector<8x1xf32> to vector<8x8xf32>
    %59 = arith.subf %55, %58 : vector<8x8xf32>
    %60 = math.exp %59 : vector<8x8xf32>
    %cst_34 = arith.constant dense<0.000000e+00> : vector<8xf32>
    %61 = vector.multi_reduction <add>, %60, %cst_34 [1] : vector<8x8xf32> to vector<8xf32>
    %62 = vector.shape_cast %61 : vector<8xf32> to vector<8x1xf32>
    %63 = tpu.reciprocal %62 {approx = true} : vector<8x1xf32> -> vector<8x1xf32>
    %64 = vector.broadcast %63 : vector<8x1xf32> to vector<8x8xf32>
    %65 = arith.mulf %60, %64 : vector<8x8xf32>
    %66 = arith.truncf %65 : vector<8x8xf32> to vector<8x8xbf16>
    %cst_35 = arith.constant dense<0.000000e+00> : vector<8x16xf32>
    %67 = tpu.matmul %66, %54, %cst_35 {dimension_numbers = #tpu.dot_dimension_numbers<[1], [0], [0], [1], [0, 0, 1, 1], [], []>} : vector<8x8xbf16>, vector<8x16xbf16>, vector<8x16xf32> -> vector<8x16xf32>
    %68 = vector.extract_strided_slice %48 {offsets = [0, 16], sizes = [8, 16], strides = [1, 1]} : vector<8x96xf32> to vector<8x16xf32>
    %69 = arith.truncf %68 : vector<8x16xf32> to vector<8x16xbf16>
    %70 = vector.extract_strided_slice %48 {offsets = [0, 48], sizes = [8, 16], strides = [1, 1]} : vector<8x96xf32> to vector<8x16xf32>
    %71 = arith.truncf %70 : vector<8x16xf32> to vector<8x16xbf16>
    %72 = vector.extract_strided_slice %48 {offsets = [0, 80], sizes = [8, 16], strides = [1, 1]} : vector<8x96xf32> to vector<8x16xf32>
    %73 = arith.truncf %72 : vector<8x16xf32> to vector<8x16xbf16>
    %cst_36 = arith.constant dense<0.000000e+00> : vector<8x8xf32>
    %74 = tpu.matmul %69, %71, %cst_36 {dimension_numbers = #tpu.dot_dimension_numbers<[1], [1], [0], [0], [0, 0, 1, 0], [], []>} : vector<8x16xbf16>, vector<8x16xbf16>, vector<8x8xf32> -> vector<8x8xf32>
    %cst_37 = arith.constant dense<0xFF800000> : vector<8xf32>
    %75 = vector.multi_reduction <maximumf>, %74, %cst_37 [1] : vector<8x8xf32> to vector<8xf32>
    %76 = vector.shape_cast %75 : vector<8xf32> to vector<8x1xf32>
    %77 = vector.broadcast %76 : vector<8x1xf32> to vector<8x8xf32>
    %78 = arith.subf %74, %77 : vector<8x8xf32>
    %79 = math.exp %78 : vector<8x8xf32>
    %cst_38 = arith.constant dense<0.000000e+00> : vector<8xf32>
    %80 = vector.multi_reduction <add>, %79, %cst_38 [1] : vector<8x8xf32> to vector<8xf32>
    %81 = vector.shape_cast %80 : vector<8xf32> to vector<8x1xf32>
    %82 = tpu.reciprocal %81 {approx = true} : vector<8x1xf32> -> vector<8x1xf32>
    %83 = vector.broadcast %82 : vector<8x1xf32> to vector<8x8xf32>
    %84 = arith.mulf %79, %83 : vector<8x8xf32>
    %85 = arith.truncf %84 : vector<8x8xf32> to vector<8x8xbf16>
    %cst_39 = arith.constant dense<0.000000e+00> : vector<8x16xf32>
    %86 = tpu.matmul %85, %73, %cst_39 {dimension_numbers = #tpu.dot_dimension_numbers<[1], [0], [0], [1], [0, 0, 1, 1], [], []>} : vector<8x8xbf16>, vector<8x16xbf16>, vector<8x16xf32> -> vector<8x16xf32>
    %87 = tpu.concatenate %67, %86 in 1 : vector<8x16xf32>, vector<8x16xf32> -> vector<8x32xf32>
    %88 = arith.truncf %87 : vector<8x32xf32> to vector<8x32xbf16>
    %cst_40 = arith.constant dense<0.000000e+00> : vector<8x32xf32>
    %89 = tpu.matmul %88, %36, %cst_40 {dimension_numbers = #tpu.dot_dimension_numbers<[1], [0], [0], [1], [0, 0, 1, 1], [], []>} : vector<8x32xbf16>, vector<32x32xbf16>, vector<8x32xf32> -> vector<8x32xf32>
    %90 = vector.extract_strided_slice %38 {offsets = [0, 0], sizes = [1, 32], strides = [1, 1]} : vector<6x32xf32> to vector<1x32xf32>
    %91 = vector.broadcast %90 : vector<1x32xf32> to vector<8x32xf32>
    %92 = arith.addf %89, %91 : vector<8x32xf32>
    %93 = arith.addf %92, %30 : vector<8x32xf32>
    %94 = vector.extract_strided_slice %38 {offsets = [1, 0], sizes = [1, 32], strides = [1, 1]} : vector<6x32xf32> to vector<1x32xf32>
    %95 = vector.extract_strided_slice %38 {offsets = [2, 0], sizes = [1, 32], strides = [1, 1]} : vector<6x32xf32> to vector<1x32xf32>
    %cst_41 = arith.constant dense<0.000000e+00> : vector<8xf32>
    %96 = vector.multi_reduction <add>, %93, %cst_41 [1] : vector<8x32xf32> to vector<8xf32>
    %97 = vector.shape_cast %96 : vector<8xf32> to vector<8x1xf32>
    %cst_42 = arith.constant 3.200000e+01 : f32
    %98 = vector.broadcast %cst_42 : f32 to vector<8x1xf32>
    %99 = arith.divf %97, %98 : vector<8x1xf32>
    %100 = vector.broadcast %99 : vector<8x1xf32> to vector<8x32xf32>
    %101 = arith.subf %93, %100 : vector<8x32xf32>
    %102 = vector.broadcast %99 : vector<8x1xf32> to vector<8x32xf32>
    %103 = arith.subf %93, %102 : vector<8x32xf32>
    %104 = arith.mulf %101, %103 : vector<8x32xf32>
    %cst_43 = arith.constant dense<0.000000e+00> : vector<8xf32>
    %105 = vector.multi_reduction <add>, %104, %cst_43 [1] : vector<8x32xf32> to vector<8xf32>
    %106 = vector.shape_cast %105 : vector<8xf32> to vector<8x1xf32>
    %cst_44 = arith.constant 3.200000e+01 : f32
    %107 = vector.broadcast %cst_44 : f32 to vector<8x1xf32>
    %108 = arith.divf %106, %107 : vector<8x1xf32>
    %109 = vector.broadcast %99 : vector<8x1xf32> to vector<8x32xf32>
    %110 = arith.subf %93, %109 : vector<8x32xf32>
    %cst_45 = arith.constant 9.99999996E-13 : f32
    %111 = vector.broadcast %cst_45 : f32 to vector<8x1xf32>
    %112 = arith.addf %108, %111 : vector<8x1xf32>
    %113 = math.rsqrt %112 : vector<8x1xf32>
    %114 = vector.broadcast %113 : vector<8x1xf32> to vector<8x32xf32>
    %115 = arith.mulf %110, %114 : vector<8x32xf32>
    %116 = vector.broadcast %94 : vector<1x32xf32> to vector<8x32xf32>
    %117 = arith.mulf %115, %116 : vector<8x32xf32>
    %118 = vector.broadcast %95 : vector<1x32xf32> to vector<8x32xf32>
    %119 = arith.addf %117, %118 : vector<8x32xf32>
    %120 = arith.truncf %119 : vector<8x32xf32> to vector<8x32xbf16>
    %cst_46 = arith.constant dense<0.000000e+00> : vector<8x64xf32>
    %121 = tpu.matmul %120, %40, %cst_46 {dimension_numbers = #tpu.dot_dimension_numbers<[1], [0], [0], [1], [0, 0, 1, 1], [], []>} : vector<8x32xbf16>, vector<32x64xbf16>, vector<8x64xf32> -> vector<8x64xf32>
    %122 = vector.broadcast %44 : vector<1x64xf32> to vector<8x64xf32>
    %123 = arith.addf %121, %122 : vector<8x64xf32>
    %cst_47 = arith.constant 5.000000e-01 : f32
    %124 = vector.broadcast %cst_47 : f32 to vector<8x64xf32>
    %125 = arith.mulf %124, %123 : vector<8x64xf32>
    %cst_48 = arith.constant 4.471500e-02 : f32
    %126 = vector.broadcast %cst_48 : f32 to vector<8x64xf32>
    %127 = arith.mulf %126, %123 : vector<8x64xf32>
    %128 = arith.mulf %127, %123 : vector<8x64xf32>
    %129 = arith.mulf %128, %123 : vector<8x64xf32>
    %130 = arith.addf %123, %129 : vector<8x64xf32>
    %cst_49 = arith.constant 0.797884583 : f32
    %131 = vector.broadcast %cst_49 : f32 to vector<8x64xf32>
    %132 = arith.mulf %131, %130 : vector<8x64xf32>
    %133 = math.tanh %132 : vector<8x64xf32>
    %cst_50 = arith.constant 1.000000e+00 : f32
    %134 = vector.broadcast %cst_50 : f32 to vector<8x64xf32>
    %135 = arith.addf %134, %133 : vector<8x64xf32>
    %136 = arith.mulf %125, %135 : vector<8x64xf32>
    %137 = arith.truncf %136 : vector<8x64xf32> to vector<8x64xbf16>
    %cst_51 = arith.constant dense<0.000000e+00> : vector<8x32xf32>
    %138 = tpu.matmul %137, %42, %cst_51 {dimension_numbers = #tpu.dot_dimension_numbers<[1], [0], [0], [1], [0, 0, 1, 1], [], []>} : vector<8x64xbf16>, vector<64x32xbf16>, vector<8x32xf32> -> vector<8x32xf32>
    %139 = vector.extract_strided_slice %38 {offsets = [3, 0], sizes = [1, 32], strides = [1, 1]} : vector<6x32xf32> to vector<1x32xf32>
    %140 = vector.broadcast %139 : vector<1x32xf32> to vector<8x32xf32>
    %141 = arith.addf %138, %140 : vector<8x32xf32>
    %142 = arith.addf %141, %119 : vector<8x32xf32>
    %143 = vector.extract_strided_slice %38 {offsets = [4, 0], sizes = [1, 32], strides = [1, 1]} : vector<6x32xf32> to vector<1x32xf32>
    %144 = vector.extract_strided_slice %38 {offsets = [5, 0], sizes = [1, 32], strides = [1, 1]} : vector<6x32xf32> to vector<1x32xf32>
    %cst_52 = arith.constant dense<0.000000e+00> : vector<8xf32>
    %145 = vector.multi_reduction <add>, %142, %cst_52 [1] : vector<8x32xf32> to vector<8xf32>
    %146 = vector.shape_cast %145 : vector<8xf32> to vector<8x1xf32>
    %cst_53 = arith.constant 3.200000e+01 : f32
    %147 = vector.broadcast %cst_53 : f32 to vector<8x1xf32>
    %148 = arith.divf %146, %147 : vector<8x1xf32>
    %149 = vector.broadcast %148 : vector<8x1xf32> to vector<8x32xf32>
    %150 = arith.subf %142, %149 : vector<8x32xf32>
    %151 = vector.broadcast %148 : vector<8x1xf32> to vector<8x32xf32>
    %152 = arith.subf %142, %151 : vector<8x32xf32>
    %153 = arith.mulf %150, %152 : vector<8x32xf32>
    %cst_54 = arith.constant dense<0.000000e+00> : vector<8xf32>
    %154 = vector.multi_reduction <add>, %153, %cst_54 [1] : vector<8x32xf32> to vector<8xf32>
    %155 = vector.shape_cast %154 : vector<8xf32> to vector<8x1xf32>
    %cst_55 = arith.constant 3.200000e+01 : f32
    %156 = vector.broadcast %cst_55 : f32 to vector<8x1xf32>
    %157 = arith.divf %155, %156 : vector<8x1xf32>
    %158 = vector.broadcast %148 : vector<8x1xf32> to vector<8x32xf32>
    %159 = arith.subf %142, %158 : vector<8x32xf32>
    %cst_56 = arith.constant 9.99999996E-13 : f32
    %160 = vector.broadcast %cst_56 : f32 to vector<8x1xf32>
    %161 = arith.addf %157, %160 : vector<8x1xf32>
    %162 = math.rsqrt %161 : vector<8x1xf32>
    %163 = vector.broadcast %162 : vector<8x1xf32> to vector<8x32xf32>
    %164 = arith.mulf %159, %163 : vector<8x32xf32>
    %165 = vector.broadcast %143 : vector<1x32xf32> to vector<8x32xf32>
    %166 = arith.mulf %164, %165 : vector<8x32xf32>
    %167 = vector.broadcast %144 : vector<1x32xf32> to vector<8x32xf32>
    %168 = arith.addf %166, %167 : vector<8x32xf32>
    %c1 = arith.constant 1 : index
    %c0_57 = arith.constant 0 : index
    %c0_58 = arith.constant 0 : index
    %169 = vector.load %arg4[%c1, %c0_57, %c0_58] : memref<2x32x96xbf16, #tpu.memory_space<vmem>>, vector<1x32x96xbf16>
    %170 = vector.shape_cast %169 : vector<1x32x96xbf16> to vector<32x96xbf16>
    %c1_59 = arith.constant 1 : index
    %c0_60 = arith.constant 0 : index
    %c0_61 = arith.constant 0 : index
    %171 = vector.load %arg5[%c1_59, %c0_60, %c0_61] : memref<2x1x96xf32, #tpu.memory_space<vmem>>, vector<1x1x96xf32>
    %172 = vector.shape_cast %171 : vector<1x1x96xf32> to vector<1x96xf32>
    %c1_62 = arith.constant 1 : index
    %c0_63 = arith.constant 0 : index
    %c0_64 = arith.constant 0 : index
    %173 = vector.load %arg6[%c1_62, %c0_63, %c0_64] : memref<2x32x32xbf16, #tpu.memory_space<vmem>>, vector<1x32x32xbf16>
    %174 = vector.shape_cast %173 : vector<1x32x32xbf16> to vector<32x32xbf16>
    %c1_65 = arith.constant 1 : index
    %c0_66 = arith.constant 0 : index
    %c0_67 = arith.constant 0 : index
    %175 = vector.load %arg7[%c1_65, %c0_66, %c0_67] : memref<2x6x32xf32, #tpu.memory_space<vmem>>, vector<1x6x32xf32>
    %176 = vector.shape_cast %175 : vector<1x6x32xf32> to vector<6x32xf32>
    %c1_68 = arith.constant 1 : index
    %c0_69 = arith.constant 0 : index
    %c0_70 = arith.constant 0 : index
    %177 = vector.load %arg8[%c1_68, %c0_69, %c0_70] : memref<2x32x64xbf16, #tpu.memory_space<vmem>>, vector<1x32x64xbf16>
    %178 = vector.shape_cast %177 : vector<1x32x64xbf16> to vector<32x64xbf16>
    %c1_71 = arith.constant 1 : index
    %c0_72 = arith.constant 0 : index
    %c0_73 = arith.constant 0 : index
    %179 = vector.load %arg9[%c1_71, %c0_72, %c0_73] : memref<2x64x32xbf16, #tpu.memory_space<vmem>>, vector<1x64x32xbf16>
    %180 = vector.shape_cast %179 : vector<1x64x32xbf16> to vector<64x32xbf16>
    %c1_74 = arith.constant 1 : index
    %c0_75 = arith.constant 0 : index
    %c0_76 = arith.constant 0 : index
    %181 = vector.load %arg10[%c1_74, %c0_75, %c0_76] : memref<2x1x64xf32, #tpu.memory_space<vmem>>, vector<1x1x64xf32>
    %182 = vector.shape_cast %181 : vector<1x1x64xf32> to vector<1x64xf32>
    %183 = arith.truncf %168 : vector<8x32xf32> to vector<8x32xbf16>
    %cst_77 = arith.constant dense<0.000000e+00> : vector<8x96xf32>
    %184 = tpu.matmul %183, %170, %cst_77 {dimension_numbers = #tpu.dot_dimension_numbers<[1], [0], [0], [1], [0, 0, 1, 1], [], []>} : vector<8x32xbf16>, vector<32x96xbf16>, vector<8x96xf32> -> vector<8x96xf32>
    %185 = vector.broadcast %172 : vector<1x96xf32> to vector<8x96xf32>
    %186 = arith.addf %184, %185 : vector<8x96xf32>
    %187 = vector.extract_strided_slice %186 {offsets = [0, 0], sizes = [8, 16], strides = [1, 1]} : vector<8x96xf32> to vector<8x16xf32>
    %188 = arith.truncf %187 : vector<8x16xf32> to vector<8x16xbf16>
    %189 = vector.extract_strided_slice %186 {offsets = [0, 32], sizes = [8, 16], strides = [1, 1]} : vector<8x96xf32> to vector<8x16xf32>
    %190 = arith.truncf %189 : vector<8x16xf32> to vector<8x16xbf16>
    %191 = vector.extract_strided_slice %186 {offsets = [0, 64], sizes = [8, 16], strides = [1, 1]} : vector<8x96xf32> to vector<8x16xf32>
    %192 = arith.truncf %191 : vector<8x16xf32> to vector<8x16xbf16>
    %cst_78 = arith.constant dense<0.000000e+00> : vector<8x8xf32>
    %193 = tpu.matmul %188, %190, %cst_78 {dimension_numbers = #tpu.dot_dimension_numbers<[1], [1], [0], [0], [0, 0, 1, 0], [], []>} : vector<8x16xbf16>, vector<8x16xbf16>, vector<8x8xf32> -> vector<8x8xf32>
    %cst_79 = arith.constant dense<0xFF800000> : vector<8xf32>
    %194 = vector.multi_reduction <maximumf>, %193, %cst_79 [1] : vector<8x8xf32> to vector<8xf32>
    %195 = vector.shape_cast %194 : vector<8xf32> to vector<8x1xf32>
    %196 = vector.broadcast %195 : vector<8x1xf32> to vector<8x8xf32>
    %197 = arith.subf %193, %196 : vector<8x8xf32>
    %198 = math.exp %197 : vector<8x8xf32>
    %cst_80 = arith.constant dense<0.000000e+00> : vector<8xf32>
    %199 = vector.multi_reduction <add>, %198, %cst_80 [1] : vector<8x8xf32> to vector<8xf32>
    %200 = vector.shape_cast %199 : vector<8xf32> to vector<8x1xf32>
    %201 = tpu.reciprocal %200 {approx = true} : vector<8x1xf32> -> vector<8x1xf32>
    %202 = vector.broadcast %201 : vector<8x1xf32> to vector<8x8xf32>
    %203 = arith.mulf %198, %202 : vector<8x8xf32>
    %204 = arith.truncf %203 : vector<8x8xf32> to vector<8x8xbf16>
    %cst_81 = arith.constant dense<0.000000e+00> : vector<8x16xf32>
    %205 = tpu.matmul %204, %192, %cst_81 {dimension_numbers = #tpu.dot_dimension_numbers<[1], [0], [0], [1], [0, 0, 1, 1], [], []>} : vector<8x8xbf16>, vector<8x16xbf16>, vector<8x16xf32> -> vector<8x16xf32>
    %206 = vector.extract_strided_slice %186 {offsets = [0, 16], sizes = [8, 16], strides = [1, 1]} : vector<8x96xf32> to vector<8x16xf32>
    %207 = arith.truncf %206 : vector<8x16xf32> to vector<8x16xbf16>
    %208 = vector.extract_strided_slice %186 {offsets = [0, 48], sizes = [8, 16], strides = [1, 1]} : vector<8x96xf32> to vector<8x16xf32>
    %209 = arith.truncf %208 : vector<8x16xf32> to vector<8x16xbf16>
    %210 = vector.extract_strided_slice %186 {offsets = [0, 80], sizes = [8, 16], strides = [1, 1]} : vector<8x96xf32> to vector<8x16xf32>
    %211 = arith.truncf %210 : vector<8x16xf32> to vector<8x16xbf16>
    %cst_82 = arith.constant dense<0.000000e+00> : vector<8x8xf32>
    %212 = tpu.matmul %207, %209, %cst_82 {dimension_numbers = #tpu.dot_dimension_numbers<[1], [1], [0], [0], [0, 0, 1, 0], [], []>} : vector<8x16xbf16>, vector<8x16xbf16>, vector<8x8xf32> -> vector<8x8xf32>
    %cst_83 = arith.constant dense<0xFF800000> : vector<8xf32>
    %213 = vector.multi_reduction <maximumf>, %212, %cst_83 [1] : vector<8x8xf32> to vector<8xf32>
    %214 = vector.shape_cast %213 : vector<8xf32> to vector<8x1xf32>
    %215 = vector.broadcast %214 : vector<8x1xf32> to vector<8x8xf32>
    %216 = arith.subf %212, %215 : vector<8x8xf32>
    %217 = math.exp %216 : vector<8x8xf32>
    %cst_84 = arith.constant dense<0.000000e+00> : vector<8xf32>
    %218 = vector.multi_reduction <add>, %217, %cst_84 [1] : vector<8x8xf32> to vector<8xf32>
    %219 = vector.shape_cast %218 : vector<8xf32> to vector<8x1xf32>
    %220 = tpu.reciprocal %219 {approx = true} : vector<8x1xf32> -> vector<8x1xf32>
    %221 = vector.broadcast %220 : vector<8x1xf32> to vector<8x8xf32>
    %222 = arith.mulf %217, %221 : vector<8x8xf32>
    %223 = arith.truncf %222 : vector<8x8xf32> to vector<8x8xbf16>
    %cst_85 = arith.constant dense<0.000000e+00> : vector<8x16xf32>
    %224 = tpu.matmul %223, %211, %cst_85 {dimension_numbers = #tpu.dot_dimension_numbers<[1], [0], [0], [1], [0, 0, 1, 1], [], []>} : vector<8x8xbf16>, vector<8x16xbf16>, vector<8x16xf32> -> vector<8x16xf32>
    %225 = tpu.concatenate %205, %224 in 1 : vector<8x16xf32>, vector<8x16xf32> -> vector<8x32xf32>
    %226 = arith.truncf %225 : vector<8x32xf32> to vector<8x32xbf16>
    %cst_86 = arith.constant dense<0.000000e+00> : vector<8x32xf32>
    %227 = tpu.matmul %226, %174, %cst_86 {dimension_numbers = #tpu.dot_dimension_numbers<[1], [0], [0], [1], [0, 0, 1, 1], [], []>} : vector<8x32xbf16>, vector<32x32xbf16>, vector<8x32xf32> -> vector<8x32xf32>
    %228 = vector.extract_strided_slice %176 {offsets = [0, 0], sizes = [1, 32], strides = [1, 1]} : vector<6x32xf32> to vector<1x32xf32>
    %229 = vector.broadcast %228 : vector<1x32xf32> to vector<8x32xf32>
    %230 = arith.addf %227, %229 : vector<8x32xf32>
    %231 = arith.addf %230, %168 : vector<8x32xf32>
    %232 = vector.extract_strided_slice %176 {offsets = [1, 0], sizes = [1, 32], strides = [1, 1]} : vector<6x32xf32> to vector<1x32xf32>
    %233 = vector.extract_strided_slice %176 {offsets = [2, 0], sizes = [1, 32], strides = [1, 1]} : vector<6x32xf32> to vector<1x32xf32>
    %cst_87 = arith.constant dense<0.000000e+00> : vector<8xf32>
    %234 = vector.multi_reduction <add>, %231, %cst_87 [1] : vector<8x32xf32> to vector<8xf32>
    %235 = vector.shape_cast %234 : vector<8xf32> to vector<8x1xf32>
    %cst_88 = arith.constant 3.200000e+01 : f32
    %236 = vector.broadcast %cst_88 : f32 to vector<8x1xf32>
    %237 = arith.divf %235, %236 : vector<8x1xf32>
    %238 = vector.broadcast %237 : vector<8x1xf32> to vector<8x32xf32>
    %239 = arith.subf %231, %238 : vector<8x32xf32>
    %240 = vector.broadcast %237 : vector<8x1xf32> to vector<8x32xf32>
    %241 = arith.subf %231, %240 : vector<8x32xf32>
    %242 = arith.mulf %239, %241 : vector<8x32xf32>
    %cst_89 = arith.constant dense<0.000000e+00> : vector<8xf32>
    %243 = vector.multi_reduction <add>, %242, %cst_89 [1] : vector<8x32xf32> to vector<8xf32>
    %244 = vector.shape_cast %243 : vector<8xf32> to vector<8x1xf32>
    %cst_90 = arith.constant 3.200000e+01 : f32
    %245 = vector.broadcast %cst_90 : f32 to vector<8x1xf32>
    %246 = arith.divf %244, %245 : vector<8x1xf32>
    %247 = vector.broadcast %237 : vector<8x1xf32> to vector<8x32xf32>
    %248 = arith.subf %231, %247 : vector<8x32xf32>
    %cst_91 = arith.constant 9.99999996E-13 : f32
    %249 = vector.broadcast %cst_91 : f32 to vector<8x1xf32>
    %250 = arith.addf %246, %249 : vector<8x1xf32>
    %251 = math.rsqrt %250 : vector<8x1xf32>
    %252 = vector.broadcast %251 : vector<8x1xf32> to vector<8x32xf32>
    %253 = arith.mulf %248, %252 : vector<8x32xf32>
    %254 = vector.broadcast %232 : vector<1x32xf32> to vector<8x32xf32>
    %255 = arith.mulf %253, %254 : vector<8x32xf32>
    %256 = vector.broadcast %233 : vector<1x32xf32> to vector<8x32xf32>
    %257 = arith.addf %255, %256 : vector<8x32xf32>
    %258 = arith.truncf %257 : vector<8x32xf32> to vector<8x32xbf16>
    %cst_92 = arith.constant dense<0.000000e+00> : vector<8x64xf32>
    %259 = tpu.matmul %258, %178, %cst_92 {dimension_numbers = #tpu.dot_dimension_numbers<[1], [0], [0], [1], [0, 0, 1, 1], [], []>} : vector<8x32xbf16>, vector<32x64xbf16>, vector<8x64xf32> -> vector<8x64xf32>
    %260 = vector.broadcast %182 : vector<1x64xf32> to vector<8x64xf32>
    %261 = arith.addf %259, %260 : vector<8x64xf32>
    %cst_93 = arith.constant 5.000000e-01 : f32
    %262 = vector.broadcast %cst_93 : f32 to vector<8x64xf32>
    %263 = arith.mulf %262, %261 : vector<8x64xf32>
    %cst_94 = arith.constant 4.471500e-02 : f32
    %264 = vector.broadcast %cst_94 : f32 to vector<8x64xf32>
    %265 = arith.mulf %264, %261 : vector<8x64xf32>
    %266 = arith.mulf %265, %261 : vector<8x64xf32>
    %267 = arith.mulf %266, %261 : vector<8x64xf32>
    %268 = arith.addf %261, %267 : vector<8x64xf32>
    %cst_95 = arith.constant 0.797884583 : f32
    %269 = vector.broadcast %cst_95 : f32 to vector<8x64xf32>
    %270 = arith.mulf %269, %268 : vector<8x64xf32>
    %271 = math.tanh %270 : vector<8x64xf32>
    %cst_96 = arith.constant 1.000000e+00 : f32
    %272 = vector.broadcast %cst_96 : f32 to vector<8x64xf32>
    %273 = arith.addf %272, %271 : vector<8x64xf32>
    %274 = arith.mulf %263, %273 : vector<8x64xf32>
    %275 = arith.truncf %274 : vector<8x64xf32> to vector<8x64xbf16>
    %cst_97 = arith.constant dense<0.000000e+00> : vector<8x32xf32>
    %276 = tpu.matmul %275, %180, %cst_97 {dimension_numbers = #tpu.dot_dimension_numbers<[1], [0], [0], [1], [0, 0, 1, 1], [], []>} : vector<8x64xbf16>, vector<64x32xbf16>, vector<8x32xf32> -> vector<8x32xf32>
    %277 = vector.extract_strided_slice %176 {offsets = [3, 0], sizes = [1, 32], strides = [1, 1]} : vector<6x32xf32> to vector<1x32xf32>
    %278 = vector.broadcast %277 : vector<1x32xf32> to vector<8x32xf32>
    %279 = arith.addf %276, %278 : vector<8x32xf32>
    %280 = arith.addf %279, %257 : vector<8x32xf32>
    %281 = vector.extract_strided_slice %176 {offsets = [4, 0], sizes = [1, 32], strides = [1, 1]} : vector<6x32xf32> to vector<1x32xf32>
    %282 = vector.extract_strided_slice %176 {offsets = [5, 0], sizes = [1, 32], strides = [1, 1]} : vector<6x32xf32> to vector<1x32xf32>
    %cst_98 = arith.constant dense<0.000000e+00> : vector<8xf32>
    %283 = vector.multi_reduction <add>, %280, %cst_98 [1] : vector<8x32xf32> to vector<8xf32>
    %284 = vector.shape_cast %283 : vector<8xf32> to vector<8x1xf32>
    %cst_99 = arith.constant 3.200000e+01 : f32
    %285 = vector.broadcast %cst_99 : f32 to vector<8x1xf32>
    %286 = arith.divf %284, %285 : vector<8x1xf32>
    %287 = vector.broadcast %286 : vector<8x1xf32> to vector<8x32xf32>
    %288 = arith.subf %280, %287 : vector<8x32xf32>
    %289 = vector.broadcast %286 : vector<8x1xf32> to vector<8x32xf32>
    %290 = arith.subf %280, %289 : vector<8x32xf32>
    %291 = arith.mulf %288, %290 : vector<8x32xf32>
    %cst_100 = arith.constant dense<0.000000e+00> : vector<8xf32>
    %292 = vector.multi_reduction <add>, %291, %cst_100 [1] : vector<8x32xf32> to vector<8xf32>
    %293 = vector.shape_cast %292 : vector<8xf32> to vector<8x1xf32>
    %cst_101 = arith.constant 3.200000e+01 : f32
    %294 = vector.broadcast %cst_101 : f32 to vector<8x1xf32>
    %295 = arith.divf %293, %294 : vector<8x1xf32>
    %296 = vector.broadcast %286 : vector<8x1xf32> to vector<8x32xf32>
    %297 = arith.subf %280, %296 : vector<8x32xf32>
    %cst_102 = arith.constant 9.99999996E-13 : f32
    %298 = vector.broadcast %cst_102 : f32 to vector<8x1xf32>
    %299 = arith.addf %295, %298 : vector<8x1xf32>
    %300 = math.rsqrt %299 : vector<8x1xf32>
    %301 = vector.broadcast %300 : vector<8x1xf32> to vector<8x32xf32>
    %302 = arith.mulf %297, %301 : vector<8x32xf32>
    %303 = vector.broadcast %281 : vector<1x32xf32> to vector<8x32xf32>
    %304 = arith.mulf %302, %303 : vector<8x32xf32>
    %305 = vector.broadcast %282 : vector<1x32xf32> to vector<8x32xf32>
    %306 = arith.addf %304, %305 : vector<8x32xf32>
    %c0_103 = arith.constant 0 : index
    %c0_104 = arith.constant 0 : index
    %c0_105 = arith.constant 0 : index
    %307 = vector.load %arg11[%c0_103, %c0_104, %c0_105] : memref<1x8x32xf32, #tpu.memory_space<vmem>>, vector<1x8x32xf32>
    %308 = vector.shape_cast %307 : vector<1x8x32xf32> to vector<8x32xf32>
    %309 = vector.shape_cast %306 : vector<8x32xf32> to vector<1x8x32xf32>
    tpu.vector_store %arg11[%c0_103, %c0_104, %c0_105], %309 {strides = array<i32>} : memref<1x8x32xf32, #tpu.memory_space<vmem>>, vector<1x8x32xf32>,
    return
  }
  func.func @transform_0(%arg0: i32) -> (i32, i32, i32) {
    %c0_i32 = arith.constant 0 : i32
    %c0_i32_0 = arith.constant 0 : i32
    %c0_i32_1 = arith.constant 0 : i32
    return %arg0, %c0_i32, %c0_i32_0 : i32, i32, i32
  }
  func.func @transform_1(%arg0: i32) -> (i32, i32) {
    %c0_i32 = arith.constant 0 : i32
    %c0_i32_0 = arith.constant 0 : i32
    %c0_i32_1 = arith.constant 0 : i32
    return %c0_i32, %c0_i32_0 : i32, i32
  }
  func.func @transform_2(%arg0: i32) -> (i32, i32) {
    %c0_i32 = arith.constant 0 : i32
    %c0_i32_0 = arith.constant 0 : i32
    %c0_i32_1 = arith.constant 0 : i32
    return %c0_i32, %c0_i32_0 : i32, i32
  }
  func.func @transform_3(%arg0: i32) -> (i32, i32, i32) {
    %c0_i32 = arith.constant 0 : i32
    %c0_i32_0 = arith.constant 0 : i32
    %c0_i32_1 = arith.constant 0 : i32
    %c0_i32_2 = arith.constant 0 : i32
    return %c0_i32, %c0_i32_0, %c0_i32_1 : i32, i32, i32
  }
  func.func @transform_4(%arg0: i32) -> (i32, i32, i32) {
    %c0_i32 = arith.constant 0 : i32
    %c0_i32_0 = arith.constant 0 : i32
    %c0_i32_1 = arith.constant 0 : i32
    %c0_i32_2 = arith.constant 0 : i32
    return %c0_i32, %c0_i32_0, %c0_i32_1 : i32, i32, i32
  }
  func.func @transform_5(%arg0: i32) -> (i32, i32, i32) {
    %c0_i32 = arith.constant 0 : i32
    %c0_i32_0 = arith.constant 0 : i32
    %c0_i32_1 = arith.constant 0 : i32
    %c0_i32_2 = arith.constant 0 : i32
    return %c0_i32, %c0_i32_0, %c0_i32_1 : i32, i32, i32
  }
  func.func @transform_6(%arg0: i32) -> (i32, i32, i32) {
    %c0_i32 = arith.constant 0 : i32
    %c0_i32_0 = arith.constant 0 : i32
    %c0_i32_1 = arith.constant 0 : i32
    %c0_i32_2 = arith.constant 0 : i32
    return %c0_i32, %c0_i32_0, %c0_i32_1 : i32, i32, i32
  }
  func.func @transform_7(%arg0: i32) -> (i32, i32, i32) {
    %c0_i32 = arith.constant 0 : i32
    %c0_i32_0 = arith.constant 0 : i32
    %c0_i32_1 = arith.constant 0 : i32
    %c0_i32_2 = arith.constant 0 : i32
    return %c0_i32, %c0_i32_0, %c0_i32_1 : i32, i32, i32
  }
  func.func @transform_8(%arg0: i32) -> (i32, i32, i32) {
    %c0_i32 = arith.constant 0 : i32
    %c0_i32_0 = arith.constant 0 : i32
    %c0_i32_1 = arith.constant 0 : i32
    %c0_i32_2 = arith.constant 0 : i32
    return %c0_i32, %c0_i32_0, %c0_i32_1 : i32, i32, i32
  }
  func.func @transform_9(%arg0: i32) -> (i32, i32, i32) {
    %c0_i32 = arith.constant 0 : i32
    %c0_i32_0 = arith.constant 0 : i32
    %c0_i32_1 = arith.constant 0 : i32
    %c0_i32_2 = arith.constant 0 : i32
    return %c0_i32, %c0_i32_0, %c0_i32_1 : i32, i32, i32
  }
  func.func @transform_10(%arg0: i32) -> (i32, i32, i32) {
    %c0_i32 = arith.constant 0 : i32
    %c0_i32_0 = arith.constant 0 : i32
    %c0_i32_1 = arith.constant 0 : i32
    return %arg0, %c0_i32, %c0_i32_0 : i32, i32, i32
  }
}

</mosaic_0001>

<llo_original>
// kernel: tpu_custom_call.1
$region0: #{tpu_custom_call.1}
  #allocation0 [shape = 'u32[]', space=smem, size = 0x4, offset = 0x4, fixed_abs, tag = 'smem constant byte address 0x4 - core index']
  #allocation1 [shape = 'u32[72,128]{1,0:T(1,128)}', space=vmem, size = 0x9000, scoped, tag = 'internal scratch']
  %s0 = inlined_call_operand.hbm [shape: f32[2,8,32], index: 0, kind: input, shape index: {}]
  %s1 = inlined_call_operand.hbm [shape: f32[8,32], index: 1, kind: input, shape index: {}]
  %s2 = inlined_call_operand.vmem [shape: f32[2,32], index: 2, kind: input, shape index: {}]
  %s3 = inlined_call_operand.vmem [shape: bf16[2,32,96], index: 3, kind: input, shape index: {}]
  %s4 = inlined_call_operand.hbm [shape: f32[2,1,96], index: 4, kind: input, shape index: {}]
  %s5 = inlined_call_operand.vmem [shape: bf16[2,32,32], index: 5, kind: input, shape index: {}]
  %s6 = inlined_call_operand.vmem [shape: f32[2,6,32], index: 6, kind: input, shape index: {}]
  %s7 = inlined_call_operand.vmem [shape: bf16[2,32,64], index: 7, kind: input, shape index: {}]
  %s8 = inlined_call_operand.vmem [shape: bf16[2,64,32], index: 8, kind: input, shape index: {}]
  %s9 = inlined_call_operand.hbm [shape: f32[2,1,64], index: 9, kind: input, shape index: {}]
  %s10 = inlined_call_operand.hbm [shape: f32[2,8,32], index: 10, kind: output, shape index: {}]
  %s11 = sld [smem:[#allocation0]]
  $region89: #{tpu_custom_call.1} parent=0
    _
  %s13 = ssub.s32 1, %s11
  %s14 = scalar_select 0, %s13, %s11
  $region1: #{tpu_custom_call.1} parent=0
    #allocation2 [shape = 'u8[8192]{0}', space=vmem, size = 0x2000, scoped, tag = 'input window, operand 0']
    #allocation3 [shape = 's32[2]{0}', space=sflag, size = 0x8, scoped, tag = 'scoped memory for tpu_custom_call.1']
    #allocation4 [shape = 's32[2]{0}', space=sflag, size = 0x8, scoped, tag = 'scoped memory for tpu_custom_call.1']
    #allocation5 [shape = 'u8[4096]{0}', space=vmem, size = 0x1000, scoped, tag = 'input window, operand 1, single buffered']
    #allocation6 [shape = 's32[1]{0}', space=sflag, size = 0x4, scoped, tag = 'scoped memory for tpu_custom_call.1']
    #allocation7 [shape = 'u8[1024]{0}', space=vmem, size = 0x400, scoped, tag = 'input window, operand 4, single buffered']
    #allocation8 [shape = 'u8[1024]{0}', space=vmem, size = 0x400, scoped, tag = 'input window, operand 9, single buffered']
    #allocation9 [shape = 's32[1]{0}', space=sflag, size = 0x4, scoped, tag = 'scoped memory for tpu_custom_call.1']
    #allocation10 [shape = 'u8[8192]{0}', space=vmem, size = 0x2000, scoped, tag = 'output window, operand 0']
    %15 = vsyncpa [#allocation3], 0
    %s16 = scalar_lea.sflag [#allocation3], 1
    %17 = vsyncpa %s16, 0
    %18 = vsyncpa [#allocation6], 0
    %19 = vsyncpa [#allocation9], 0
    %20 = vsyncpa [#allocation4], 0
    %s21 = scalar_lea.sflag [#allocation4], 1
    %22 = vsyncpa %s21, 0
    loop: start=0, step=1, limit=4
    $region2: #{tpu_custom_call.1} parent=1 // loop_pre_header
      _
    $region3: #{tpu_custom_call.1} parent=1 // loop_header
      %s24 = sphi 0, %s28
      %p25 = scmp.ge.s32.totalorder %s24, 4
      %s34 = sphi 0, %s36
      %s37 = sphi 0, %s34
      %s38 = sphi 0, %s37
      %s54 = sphi 0, %s38
      %s58 = sphi 0, %s58
      %s60 = sphi 0, %s58
      %s61 = sphi 0, %s60
      %s75 = sphi 0, %s61
      %s79 = sphi 0, %s79
      %s81 = sphi 0, %s79
      %s82 = sphi 0, %s81
      %s96 = sphi 0, %s82
      %s100 = sphi 0, %s100
      %s102 = sphi 0, %s100
      %s103 = sphi 0, %s102
      %s117 = sphi 0, %s103
      %s121 = sphi 0, %s121
      %s123 = sphi 0, %s121
      %s124 = sphi 0, %s123
      %s138 = sphi 0, %s124
      %s142 = sphi 0, %s142
      %s144 = sphi 0, %s142
      %s145 = sphi 0, %s144
      %s159 = sphi 0, %s145
      %s163 = sphi 0, %s163
      %s165 = sphi 0, %s163
      %s166 = sphi 0, %s165
      %s180 = sphi 0, %s166
      %s184 = sphi 0, %s184
      %s186 = sphi 0, %s184
      %s187 = sphi 0, %s186
      %s201 = sphi 0, %s187
      %s205 = sphi 0, %s205
      %s207 = sphi 0, %s205
      %s208 = sphi 0, %s207
      %s222 = sphi 0, %s208
      %s226 = sphi 0, %s226
      %s228 = sphi 0, %s226
      %s229 = sphi 0, %s228
      %s243 = sphi 0, %s229
      %s249 = sphi 0, %s251
      %s252 = sphi 0, %s249
      %s253 = sphi 0, %s252
      %s269 = sphi 0, %s253
    $region4: #{tpu_custom_call.1} parent=1 // loop_header_branch
      %27 = sbr.rel (%p25) target = $region8
    $region5: #{tpu_custom_call.1} parent=1 // loop_body
      %s29 = ssub.s32 %s24, 1
      %s30 = ssub.s32 %s24, 2
      %s31 = sadd.s32 %s24, 1
      %s32 = ssub.s32 %s24, %s31
      %p33 = scmp.eq.s32.totalorder %s32, 0
      %s35 = sadd.s32 %s34, 1
      %s36 = scalar_select %p33, %s34, %s35
      %p39 = pneg %p33
      %p40 = scmp.eq.s32.totalorder %s24, 1
      %p41 = por %p39, %p40
      %p42 = scmp.ne.s32.totalorder %s34, %s37
      %p43 = scmp.eq.s32.totalorder %s24, 0
      %p44 = por %p42, %p43
      %p45 = scmp.ne.s32.totalorder %s34, %s37
      %p46 = scmp.eq.s32.totalorder %s29, 1
      %p47 = por %p45, %p46
      %p48 = scmp.ne.s32.totalorder %s37, %s38
      %p49 = scmp.eq.s32.totalorder %s29, 0
      %p50 = por %p48, %p49
      %p51 = scmp.ne.s32.totalorder %s37, %s38
      %p52 = scmp.eq.s32.totalorder %s30, 1
      %p53 = por %p51, %p52
      %p55 = scmp.ne.s32.totalorder %s38, %s54
      %p56 = scmp.eq.s32.totalorder %s30, 0
      %p57 = por %p55, %p56
      %s59 = sadd.s32 %s58, 1
      %p62 = scmp.eq.s32.totalorder %s24, 1
      %p63 = scmp.ne.s32.totalorder %s58, %s60
      %p64 = scmp.eq.s32.totalorder %s24, 0
      %p65 = por %p63, %p64
      %p66 = scmp.ne.s32.totalorder %s58, %s60
      %p67 = scmp.eq.s32.totalorder %s29, 1
      %p68 = por %p66, %p67
      %p69 = scmp.ne.s32.totalorder %s60, %s61
      %p70 = scmp.eq.s32.totalorder %s29, 0
      %p71 = por %p69, %p70
      %p72 = scmp.ne.s32.totalorder %s60, %s61
      %p73 = scmp.eq.s32.totalorder %s30, 1
      %p74 = por %p72, %p73
      %p76 = scmp.ne.s32.totalorder %s61, %s75
      %p77 = scmp.eq.s32.totalorder %s30, 0
      %p78 = por %p76, %p77
      %s80 = sadd.s32 %s79, 1
      %p83 = scmp.eq.s32.totalorder %s24, 1
      %p84 = scmp.ne.s32.totalorder %s79, %s81
      %p85 = scmp.eq.s32.totalorder %s24, 0
      %p86 = por %p84, %p85
      %p87 = scmp.ne.s32.totalorder %s79, %s81
      %p88 = scmp.eq.s32.totalorder %s29, 1
      %p89 = por %p87, %p88
      %p90 = scmp.ne.s32.totalorder %s81, %s82
      %p91 = scmp.eq.s32.totalorder %s29, 0
      %p92 = por %p90, %p91
      %p93 = scmp.ne.s32.totalorder %s81, %s82
      %p94 = scmp.eq.s32.totalorder %s30, 1
      %p95 = por %p93, %p94
      %p97 = scmp.ne.s32.totalorder %s82, %s96
      %p98 = scmp.eq.s32.totalorder %s30, 0
      %p99 = por %p97, %p98
      %s101 = sadd.s32 %s100, 1
      %p104 = scmp.eq.s32.totalorder %s24, 1
      %p105 = scmp.ne.s32.totalorder %s100, %s102
      %p106 = scmp.eq.s32.totalorder %s24, 0
      %p107 = por %p105, %p106
      %p108 = scmp.ne.s32.totalorder %s100, %s102
      %p109 = scmp.eq.s32.totalorder %s29, 1
      %p110 = por %p108, %p109
      %p111 = scmp.ne.s32.totalorder %s102, %s103
      %p112 = scmp.eq.s32.totalorder %s29, 0
      %p113 = por %p111, %p112
      %p114 = scmp.ne.s32.totalorder %s102, %s103
      %p115 = scmp.eq.s32.totalorder %s30, 1
      %p116 = por %p114, %p115
      %p118 = scmp.ne.s32.totalorder %s103, %s117
      %p119 = scmp.eq.s32.totalorder %s30, 0
      %p120 = por %p118, %p119
      %s122 = sadd.s32 %s121, 1
      %p125 = scmp.eq.s32.totalorder %s24, 1
      %p126 = scmp.ne.s32.totalorder %s121, %s123
      %p127 = scmp.eq.s32.totalorder %s24, 0
      %p128 = por %p126, %p127
      %p129 = scmp.ne.s32.totalorder %s121, %s123
      %p130 = scmp.eq.s32.totalorder %s29, 1
      %p131 = por %p129, %p130
      %p132 = scmp.ne.s32.totalorder %s123, %s124
      %p133 = scmp.eq.s32.totalorder %s29, 0
      %p134 = por %p132, %p133
      %p135 = scmp.ne.s32.totalorder %s123, %s124
      %p136 = scmp.eq.s32.totalorder %s30, 1
      %p137 = por %p135, %p136
      %p139 = scmp.ne.s32.totalorder %s124, %s138
      %p140 = scmp.eq.s32.totalorder %s30, 0
      %p141 = por %p139, %p140
      %s143 = sadd.s32 %s142, 1
      %p146 = scmp.eq.s32.totalorder %s24, 1
      %p147 = scmp.ne.s32.totalorder %s142, %s144
      %p148 = scmp.eq.s32.totalorder %s24, 0
      %p149 = por %p147, %p148
      %p150 = scmp.ne.s32.totalorder %s142, %s144
      %p151 = scmp.eq.s32.totalorder %s29, 1
      %p152 = por %p150, %p151
      %p153 = scmp.ne.s32.totalorder %s144, %s145
      %p154 = scmp.eq.s32.totalorder %s29, 0
      %p155 = por %p153, %p154
      %p156 = scmp.ne.s32.totalorder %s144, %s145
      %p157 = scmp.eq.s32.totalorder %s30, 1
      %p158 = por %p156, %p157
      %p160 = scmp.ne.s32.totalorder %s145, %s159
      %p161 = scmp.eq.s32.totalorder %s30, 0
      %p162 = por %p160, %p161
      %s164 = sadd.s32 %s163, 1
      %p167 = scmp.eq.s32.totalorder %s24, 1
      %p168 = scmp.ne.s32.totalorder %s163, %s165
      %p169 = scmp.eq.s32.totalorder %s24, 0
      %p170 = por %p168, %p169
      %p171 = scmp.ne.s32.totalorder %s163, %s165
      %p172 = scmp.eq.s32.totalorder %s29, 1
      %p173 = por %p171, %p172
      %p174 = scmp.ne.s32.totalorder %s165, %s166
      %p175 = scmp.eq.s32.totalorder %s29, 0
      %p176 = por %p174, %p175
      %p177 = scmp.ne.s32.totalorder %s165, %s166
      %p178 = scmp.eq.s32.totalorder %s30, 1
      %p179 = por %p177, %p178
      %p181 = scmp.ne.s32.totalorder %s166, %s180
      %p182 = scmp.eq.s32.totalorder %s30, 0
      %p183 = por %p181, %p182
      %s185 = sadd.s32 %s184, 1
      %p188 = scmp.eq.s32.totalorder %s24, 1
      %p189 = scmp.ne.s32.totalorder %s184, %s186
      %p190 = scmp.eq.s32.totalorder %s24, 0
      %p191 = por %p189, %p190
      %p192 = scmp.ne.s32.totalorder %s184, %s186
      %p193 = scmp.eq.s32.totalorder %s29, 1
      %p194 = por %p192, %p193
      %p195 = scmp.ne.s32.totalorder %s186, %s187
      %p196 = scmp.eq.s32.totalorder %s29, 0
      %p197 = por %p195, %p196
      %p198 = scmp.ne.s32.totalorder %s186, %s187
      %p199 = scmp.eq.s32.totalorder %s30, 1
      %p200 = por %p198, %p199
      %p202 = scmp.ne.s32.totalorder %s187, %s201
      %p203 = scmp.eq.s32.totalorder %s30, 0
      %p204 = por %p202, %p203
      %s206 = sadd.s32 %s205, 1
      %p209 = scmp.eq.s32.totalorder %s24, 1
      %p210 = scmp.ne.s32.totalorder %s205, %s207
      %p211 = scmp.eq.s32.totalorder %s24, 0
      %p212 = por %p210, %p211
      %p213 = scmp.ne.s32.totalorder %s205, %s207
      %p214 = scmp.eq.s32.totalorder %s29, 1
      %p215 = por %p213, %p214
      %p216 = scmp.ne.s32.totalorder %s207, %s208
      %p217 = scmp.eq.s32.totalorder %s29, 0
      %p218 = por %p216, %p217
      %p219 = scmp.ne.s32.totalorder %s207, %s208
      %p220 = scmp.eq.s32.totalorder %s30, 1
      %p221 = por %p219, %p220
      %p223 = scmp.ne.s32.totalorder %s208, %s222
      %p224 = scmp.eq.s32.totalorder %s30, 0
      %p225 = por %p223, %p224
      %s227 = sadd.s32 %s226, 1
      %p230 = scmp.eq.s32.totalorder %s24, 1
      %p231 = scmp.ne.s32.totalorder %s226, %s228
      %p232 = scmp.eq.s32.totalorder %s24, 0
      %p233 = por %p231, %p232
      %p234 = scmp.ne.s32.totalorder %s226, %s228
      %p235 = scmp.eq.s32.totalorder %s29, 1
      %p236 = por %p234, %p235
      %p237 = scmp.ne.s32.totalorder %s228, %s229
      %p238 = scmp.eq.s32.totalorder %s29, 0
      %p239 = por %p237, %p238
      %p240 = scmp.ne.s32.totalorder %s228, %s229
      %p241 = scmp.eq.s32.totalorder %s30, 1
      %p242 = por %p240, %p241
      %p244 = scmp.ne.s32.totalorder %s229, %s243
      %p245 = scmp.eq.s32.totalorder %s30, 0
      %p246 = por %p244, %p245
      %s247 = ssub.s32 %s24, %s31
      %p248 = scmp.eq.s32.totalorder %s247, 0
      %s250 = sadd.s32 %s249, 1
      %s251 = scalar_select %p248, %s249, %s250
      %p254 = pneg %p248
      %p255 = scmp.eq.s32.totalorder %s24, 1
      %p256 = por %p254, %p255
      %p257 = scmp.ne.s32.totalorder %s249, %s252
      %p258 = scmp.eq.s32.totalorder %s24, 0
      %p259 = por %p257, %p258
      %p260 = scmp.ne.s32.totalorder %s249, %s252
      %p261 = scmp.eq.s32.totalorder %s29, 1
      %p262 = por %p260, %p261
      %p263 = scmp.ne.s32.totalorder %s252, %s253
      %p264 = scmp.eq.s32.totalorder %s29, 0
      %p265 = por %p263, %p264
      %p266 = scmp.ne.s32.totalorder %s252, %s253
      %p267 = scmp.eq.s32.totalorder %s30, 1
      %p268 = por %p266, %p267
      %p270 = scmp.ne.s32.totalorder %s253, %s269
      %p271 = scmp.eq.s32.totalorder %s30, 0
      %p272 = por %p270, %p271
      %p273 = scmp.le.s32.totalorder 1, %s24
      %p274 = scmp.lt.s32.totalorder %s24, 3
      %p275 = pnand %p273, %p274
      %p276 = pneg %p275
      // Predicated region
      $region9: #{tpu_custom_call.1} parent=5 // pred_check
        _
      $region10: #{tpu_custom_call.1} parent=5 // pred_check_branch
        %278 = sbr.rel (%p275) target = $region12
      $region11: #{tpu_custom_call.1} parent=5 // pred_region
        %s279 = ssub.s32 %s24, 1
        // Predicated region
        $region13: #{tpu_custom_call.1} parent=11 // pred_check
          %p280 = pneg %p71
        $region14: #{tpu_custom_call.1} parent=11 // pred_check_branch
          %282 = sbr.rel (%p280) target = $region16
        $region15: #{tpu_custom_call.1} parent=11 // pred_region
          %284 = vsyncadd [#allocation6], 0
          %s286 = sshll.u32 %s1, 4
          %s287 = int_to_ptr.hbm [resolvable:$true] %s286
          %s288 = sshll.u32 [#allocation5], 4
          %s289 = int_to_ptr.vmem [resolvable:$true] %s288
          %291 = dma.hbm_to_vmem [thread:$0]  %s287, 128, %s289, [#allocation6]
        $region16: #{tpu_custom_call.1} parent=11 // pred_fallthru
          _
        // Predicated region
        $region17: #{tpu_custom_call.1} parent=11 // pred_check
          %p292 = pneg %p92
        $region18: #{tpu_custom_call.1} parent=11 // pred_check_branch
          %294 = sbr.rel (%p292) target = $region20
        $region19: #{tpu_custom_call.1} parent=11 // pred_region
          _
        $region20: #{tpu_custom_call.1} parent=11 // pred_fallthru
          _
        // Predicated region
        $region21: #{tpu_custom_call.1} parent=11 // pred_check
          %p295 = pneg %p113
        $region22: #{tpu_custom_call.1} parent=11 // pred_check_branch
          %297 = sbr.rel (%p295) target = $region24
        $region23: #{tpu_custom_call.1} parent=11 // pred_region
          _
        $region24: #{tpu_custom_call.1} parent=11 // pred_fallthru
          _
        // Predicated region
        $region25: #{tpu_custom_call.1} parent=11 // pred_check
          %p298 = pneg %p134
        $region26: #{tpu_custom_call.1} parent=11 // pred_check_branch
          %300 = sbr.rel (%p298) target = $region28
        $region27: #{tpu_custom_call.1} parent=11 // pred_region
          %302 = vsyncadd [#allocation6], 0
          %s303 = sshll.u32 %s4, 4
          %s304 = int_to_ptr.hbm [resolvable:$true] %s303
          %s305 = sshll.u32 [#allocation7], 4
          %s306 = int_to_ptr.vmem [resolvable:$true] %s305
          %311 = dma.hbm_to_vmem [thread:$0]  %s304, 32, %s306, [#allocation6], 16, 16, 1
        $region28: #{tpu_custom_call.1} parent=11 // pred_fallthru
          _
        // Predicated region
        $region29: #{tpu_custom_call.1} parent=11 // pred_check
          %p312 = pneg %p155
        $region30: #{tpu_custom_call.1} parent=11 // pred_check_branch
          %314 = sbr.rel (%p312) target = $region32
        $region31: #{tpu_custom_call.1} parent=11 // pred_region
          _
        $region32: #{tpu_custom_call.1} parent=11 // pred_fallthru
          _
        // Predicated region
        $region33: #{tpu_custom_call.1} parent=11 // pred_check
          %p315 = pneg %p176
        $region34: #{tpu_custom_call.1} parent=11 // pred_check_branch
          %317 = sbr.rel (%p315) target = $region36
        $region35: #{tpu_custom_call.1} parent=11 // pred_region
          _
        $region36: #{tpu_custom_call.1} parent=11 // pred_fallthru
          _
        // Predicated region
        $region37: #{tpu_custom_call.1} parent=11 // pred_check
          %p318 = pneg %p197
        $region38: #{tpu_custom_call.1} parent=11 // pred_check_branch
          %320 = sbr.rel (%p318) target = $region40
        $region39: #{tpu_custom_call.1} parent=11 // pred_region
          _
        $region40: #{tpu_custom_call.1} parent=11 // pred_fallthru
          _
        // Predicated region
        $region41: #{tpu_custom_call.1} parent=11 // pred_check
          %p321 = pneg %p218
        $region42: #{tpu_custom_call.1} parent=11 // pred_check_branch
          %323 = sbr.rel (%p321) target = $region44
        $region43: #{tpu_custom_call.1} parent=11 // pred_region
          _
        $region44: #{tpu_custom_call.1} parent=11 // pred_fallthru
          _
        // Predicated region
        $region45: #{tpu_custom_call.1} parent=11 // pred_check
          %p324 = pneg %p239
        $region46: #{tpu_custom_call.1} parent=11 // pred_check_branch
          %326 = sbr.rel (%p324) target = $region48
        $region47: #{tpu_custom_call.1} parent=11 // pred_region
          %328 = vsyncadd [#allocation9], 0
          %s329 = sshll.u32 %s9, 4
          %s330 = int_to_ptr.hbm [resolvable:$true] %s329
          %s331 = sshll.u32 [#allocation8], 4
          %s332 = int_to_ptr.vmem [resolvable:$true] %s331
          %337 = dma.hbm_to_vmem [thread:$0]  %s330, 32, %s332, [#allocation9], 16, 16, 1
        $region48: #{tpu_custom_call.1} parent=11 // pred_fallthru
          _
      $region12: #{tpu_custom_call.1} parent=5 // pred_fallthru
        _
      %p338 = scmp.lt.s32.totalorder %s24, 2
      // Predicated region
      $region49: #{tpu_custom_call.1} parent=5 // pred_check
        %p339 = pneg %p338
      $region50: #{tpu_custom_call.1} parent=5 // pred_check_branch
        %341 = sbr.rel (%p339) target = $region52
      $region51: #{tpu_custom_call.1} parent=5 // pred_region
        // Predicated region
        $region53: #{tpu_custom_call.1} parent=51 // pred_check
          %p342 = pneg %p44
        $region54: #{tpu_custom_call.1} parent=51 // pred_check_branch
          %344 = sbr.rel (%p342) target = $region56
        $region55: #{tpu_custom_call.1} parent=51 // pred_region
          %s345 = sand.u32 %s34, 1
          %s346 = scalar_lea.sflag [#allocation3], %s345
          %s347 = sand.u32 %s34, 1
          %s348 = smul.addr %s347, 8
          %s349 = scalar_lea.vmem [#allocation2], %s348
          %351 = vsyncadd %s346, 0
          %s352 = smul.addr %s24, 8
          %s353 = scalar_lea.hbm %s0, %s352
          %s355 = sshll.u32 %s353, 4
          %s356 = int_to_ptr.hbm [resolvable:$true] %s355
          %s357 = sshll.u32 %s349, 4
          %s358 = int_to_ptr.vmem [resolvable:$true] %s357
          %360 = dma.hbm_to_vmem [thread:$0]  %s356, 128, %s358, %s346
        $region56: #{tpu_custom_call.1} parent=51 // pred_fallthru
          _
      $region52: #{tpu_custom_call.1} parent=5 // pred_fallthru
        _
      %p361 = scmp.le.s32.totalorder 1, %s24
      %p362 = scmp.lt.s32.totalorder %s24, 3
      %p363 = pnand %p361, %p362
      %p364 = pneg %p363
      // Predicated region
      $region57: #{tpu_custom_call.1} parent=5 // pred_check
        _
      $region58: #{tpu_custom_call.1} parent=5 // pred_check_branch
        %366 = sbr.rel (%p363) target = $region60
      $region59: #{tpu_custom_call.1} parent=5 // pred_region
        %s367 = ssub.s32 %s24, 1
        %s368 = sand.u32 %s37, 1
        %s369 = scalar_lea.sflag [#allocation3], %s368
        %s370 = sand.u32 %s37, 1
        %s371 = smul.addr %s370, 8
        %s372 = scalar_lea.vmem [#allocation2], %s371
        // Predicated region
        $region61: #{tpu_custom_call.1} parent=59 // pred_check
          %p373 = pneg %p50
        $region62: #{tpu_custom_call.1} parent=59 // pred_check_branch
          %375 = sbr.rel (%p373) target = $region64
        $region63: #{tpu_custom_call.1} parent=59 // pred_region
          %377 = dma.done %s369, 128
        $region64: #{tpu_custom_call.1} parent=59 // pred_fallthru
          _
        // Predicated region
        $region65: #{tpu_custom_call.1} parent=59 // pred_check
          %p378 = pneg %p71
        $region66: #{tpu_custom_call.1} parent=59 // pred_check_branch
          %380 = sbr.rel (%p378) target = $region68
        $region67: #{tpu_custom_call.1} parent=59 // pred_region
          %382 = dma.done [#allocation6], 128
        $region68: #{tpu_custom_call.1} parent=59 // pred_fallthru
          _
        // Predicated region
        $region69: #{tpu_custom_call.1} parent=59 // pred_check
          %p383 = pneg %p134
        $region70: #{tpu_custom_call.1} parent=59 // pred_check_branch
          %385 = sbr.rel (%p383) target = $region72
        $region71: #{tpu_custom_call.1} parent=59 // pred_region
          %387 = dma.done [#allocation6], 32
        $region72: #{tpu_custom_call.1} parent=59 // pred_fallthru
          _
        // Predicated region
        $region73: #{tpu_custom_call.1} parent=59 // pred_check
          %p388 = pneg %p239
        $region74: #{tpu_custom_call.1} parent=59 // pred_check_branch
          %390 = sbr.rel (%p388) target = $region76
        $region75: #{tpu_custom_call.1} parent=59 // pred_region
          %392 = dma.done [#allocation9], 32
        $region76: #{tpu_custom_call.1} parent=59 // pred_fallthru
          _
        %s393 = sand.u32 %s37, 1
        %s394 = scalar_lea.sflag [#allocation3], %s393
        %s395 = sand.u32 %s37, 1
        %s396 = smul.addr %s395, 8
        %s397 = scalar_lea.vmem [#allocation2], %s396
        %p398 = pneg %p50
        %p399 = pneg %p47
        %p400 = pneg %p71
        %p401 = pneg %p68
        %p402 = pneg %p92
        %p403 = pneg %p89
        %p404 = pneg %p113
        %p405 = pneg %p110
        %p406 = pneg %p134
        %p407 = pneg %p131
        %p408 = pneg %p155
        %p409 = pneg %p152
        %p410 = pneg %p176
        %p411 = pneg %p173
        %p412 = pneg %p197
        %p413 = pneg %p194
        %p414 = pneg %p218
        %p415 = pneg %p215
        %p416 = pneg %p239
        %p417 = pneg %p236
        %p418 = pneg %p265
        %p419 = pneg %p262
        %s420 = sand.u32 %s252, 1
        %s421 = scalar_lea.sflag [#allocation4], %s420
        %s422 = sand.u32 %s252, 1
        %s423 = smul.addr %s422, 8
        %s424 = scalar_lea.vmem [#allocation10], %s423
        %v426 = vld [vmem:[%s2] sm:$0x3]
        %v427 = vld [vmem:[%s372] sm:$0xff]
        %v428 = vld [vmem:[#allocation5] sm:$0xff]
        %v429 = vadd.f32 %v427, %v428
        %vm430 = vcmask 261120
        %v431 = vsel %vm430, %v429, 0.0
        %432 = vadd.xlane.f32.xlu0 %v431
        %v433 = vpop.xlane.xlu0 %432
        %v434 = vrcp.pop 32.0
        %v435 = vmul.f32 32.0, %v434
        %v436 = vsub.f32 1.0, %v435
        %v437 = vmul.f32 %v434, %v436
        %v438 = vadd.f32 %v434, %v437
        %vm439 = vweird.f32 %v434
        %v440 = vsel %vm439, %v434, %v438
        %v441 = vmul.f32 %v433, %v440
        %v442 = vsub.f32 %v429, %v441
        %v443 = vmul.f32 %v442, %v442
        %v444 = vsel %vm430, %v443, 0.0
        %445 = vadd.xlane.f32.xlu0 %v444
        %v446 = vpop.xlane.xlu0 %445
        %v447 = vmul.f32 %v446, %v440
        %v448 = vadd.f32 %v447, 1e-12
        %v449 = vrsqrt.pop %v448
        %v450 = vmul.f32 %v449, %v448
        %v451 = vmul.f32 %v450, %v449
        %v452 = vmul.f32 0.5, %v451
        %v453 = vsub.f32 1.5, %v452
        %v454 = vmul.f32 %v449, %v453
        %vm455 = vweird.f32 %v448
        %vm456 = vweird.f32 %v449
        %vm457 = vmor %vm455, %vm456
        %v458 = vsel %vm457, %v449, %v454
        %v459 = vmul.f32 %v442, %v458
        %v460 = vperm.slane %v426, 0
        %v461 = vmul.f32 %v459, %v460
        %v462 = vperm.slane %v426, 1
        %v463 = vadd.f32 %v461, %v462
        %v464 = vld [vmem:[%s3] sm:$0xf]
        %v465 = vld [vmem:[%s3 + $0x4] sm:$0xf]
        %v466 = vld [vmem:[%s3 + $0x8] sm:$0xf]
        %v467 = vld [vmem:[%s3 + $0xc] sm:$0xf]
        %v468 = vld [vmem:[#allocation7] sm:$0x1]
        %v469 = vld [vmem:[%s5] sm:$0xf]
        %v470 = vld [vmem:[%s5 + $0x4] sm:$0xf]
        %v471 = vld [vmem:[%s5 + $0x8] sm:$0xf]
        %v472 = vld [vmem:[%s5 + $0xc] sm:$0xf]
        %v473 = vld [vmem:[%s6] sm:$0x3f]
        %v474 = vld [vmem:[%s7] sm:$0xf]
        %v475 = vld [vmem:[%s7 + $0x4] sm:$0xf]
        %v476 = vld [vmem:[%s7 + $0x8] sm:$0xf]
        %v477 = vld [vmem:[%s7 + $0xc] sm:$0xf]
        %v478 = vld [vmem:[%s8] sm:$0xf]
        %v479 = vld [vmem:[%s8 + $0x4] sm:$0xf]
        %v480 = vld [vmem:[%s8 + $0x8] sm:$0xf]
        %v481 = vld [vmem:[%s8 + $0xc] sm:$0xf]
        %v482 = vld [vmem:[%s8 + $0x10] sm:$0xf]
        %v483 = vld [vmem:[%s8 + $0x14] sm:$0xf]
        %v484 = vld [vmem:[%s8 + $0x18] sm:$0xf]
        %v485 = vld [vmem:[%s8 + $0x1c] sm:$0xf]
        %v486 = vld [vmem:[#allocation8] sm:$0x1]
        %v487 = vpack.c.bf16 %v463, %v463
        %v489 = vperm.slane %v468, 0
        %v495 = vunpack.c.l.b16 %v464
        %v496 = vunpack.c.l.b16 %v465
        %v497 = vunpack.c.l.b16 %v466
        %v498 = vunpack.c.l.b16 %v467
        %v499 = vpack.c.b16 %v496, %v495
        %v500 = vpack.c.b16 %v498, %v497
        %v504 = vsel %vm430, %v487, 0
        %506 = vmatpush.bf16.msra.mxu0 0
        %507 = vmatpush.bf16.msra.mxu0 0
        %508 = vmatpush.bf16.msra.mxu0 0
        %509 = vmatpush.bf16.msra.mxu0 0
        %510 = vmatpush.bf16.msra.mxu0 0
        %511 = vmatpush.bf16.msra.mxu0 0
        %512 = vmatpush.bf16.msra.mxu0 %v500
        %513 = vmatpush.bf16.msra.mxu0 %v499
        %514 = vmatmul.bf16.gmra.mxu0 %v504
        %v515 = vpop.f32.mrf.mxu0
        %v516 = vadd.f32 %v489, %v515
        %v517 = vpop.f32.mrf.mxu0
        %518 = vdwg.mxu0
        %v519 = vpack.c.bf16 %v516, %v516
        %521 = vrot.lane.b32.xlu0 %v519, 96
        %v522 = vpop.permute.xlu0 %521
        %vm523 = vcmask 130048
        %v525 = vsel %vm523, %v519, 0
        %v528 = vsel %vm523, %v522, 0
        %530 = vmatpush.bf16.xpose.msra.mxu0 0
        %531 = vmatpush.bf16.xpose.msra.mxu0 0
        %532 = vmatpush.bf16.xpose.msra.mxu0 0
        %533 = vmatpush.bf16.xpose.msra.mxu0 0
        %534 = vmatpush.bf16.xpose.msra.mxu0 0
        %535 = vmatpush.bf16.xpose.msra.mxu0 0
        %536 = vmatpush.bf16.xpose.msra.mxu0 0
        %537 = vmatpush.bf16.xpose.msra.mxu0 %v528
        %538 = vmatmul.bf16.gmra.mxu0 %v525
        %v539 = vpop.f32.mrf.mxu0
        %v540 = vadd.f32 0.0, %v539
        %v541 = vpop.f32.mrf.mxu0
        %542 = vdwg.mxu0
        %vm543 = vcmask 64512
        %v544 = vsel %vm543, %v540, -inf
        %545 = vmax.xlane.f32.xlu0 %v544
        %v546 = vpop.xlane.xlu0 %545
        %v547 = vsub.f32 %v540, %v546
        %v548 = vmul.f32 %v547, 1.442695
        %v549 = vpow.pop %v548
        %v550 = vsel %vm543, %v549, 0.0
        %551 = vadd.xlane.f32.xlu0 %v550
        %v552 = vpop.xlane.xlu0 %551
        %v553 = vrcp.pop %v552
        %v554 = vmul.f32 %v549, %v553
        %v555 = vpack.c.bf16 %v554, %v554
        %556 = vrot.lane.b32.xlu0 %v519, 64
        %v557 = vpop.permute.xlu0 %556
        %v559 = vsel %vm543, %v555, 0
        %vm561 = vcmask 1043456
        %v563 = vsel %vm561, %v557, 0
        %565 = vmatpush.bf16.msra.mxu0 0
        %566 = vmatpush.bf16.msra.mxu0 0
        %567 = vmatpush.bf16.msra.mxu0 0
        %568 = vmatpush.bf16.msra.mxu0 0
        %569 = vmatpush.bf16.msra.mxu0 0
        %570 = vmatpush.bf16.msra.mxu0 0
        %571 = vmatpush.bf16.msra.mxu0 0
        %572 = vmatpush.bf16.msra.mxu0 %v563
        %573 = vmatmul.bf16.gmra.mxu0 %v559
        %v574 = vpop.f32.mrf.mxu0
        %v575 = vadd.f32 0.0, %v574
        %v576 = vpop.f32.mrf.mxu0
        %577 = vdwg.mxu0
        %578 = vrot.lane.b32.xlu0 %v519, 112
        %v579 = vpop.permute.xlu0 %578
        %580 = vrot.lane.b32.xlu0 %v519, 80
        %v581 = vpop.permute.xlu0 %580
        %v583 = vsel %vm523, %v579, 0
        %v586 = vsel %vm523, %v581, 0
        %588 = vmatpush.bf16.xpose.msra.mxu0 0
        %589 = vmatpush.bf16.xpose.msra.mxu0 0
        %590 = vmatpush.bf16.xpose.msra.mxu0 0
        %591 = vmatpush.bf16.xpose.msra.mxu0 0
        %592 = vmatpush.bf16.xpose.msra.mxu0 0
        %593 = vmatpush.bf16.xpose.msra.mxu0 0
        %594 = vmatpush.bf16.xpose.msra.mxu0 0
        %595 = vmatpush.bf16.xpose.msra.mxu0 %v586
        %596 = vmatmul.bf16.gmra.mxu0 %v583
        %v597 = vpop.f32.mrf.mxu0
        %v598 = vadd.f32 0.0, %v597
        %v599 = vpop.f32.mrf.mxu0
        %600 = vdwg.mxu0
        %v601 = vsel %vm543, %v598, -inf
        %602 = vmax.xlane.f32.xlu0 %v601
        %v603 = vpop.xlane.xlu0 %602
        %v604 = vsub.f32 %v598, %v603
        %v605 = vmul.f32 %v604, 1.442695
        %v606 = vpow.pop %v605
        %v607 = vsel %vm543, %v606, 0.0
        %608 = vadd.xlane.f32.xlu0 %v607
        %v609 = vpop.xlane.xlu0 %608
        %v610 = vrcp.pop %v609
        %v611 = vmul.f32 %v606, %v610
        %v612 = vpack.c.bf16 %v611, %v611
        %613 = vrot.lane.b32.xlu0 %v519, 48
        %v614 = vpop.permute.xlu0 %613
        %v616 = vsel %vm543, %v612, 0
        %v619 = vsel %vm561, %v614, 0
        %621 = vmatpush.bf16.msra.mxu0 0
        %622 = vmatpush.bf16.msra.mxu0 0
        %623 = vmatpush.bf16.msra.mxu0 0
        %624 = vmatpush.bf16.msra.mxu0 0
        %625 = vmatpush.bf16.msra.mxu0 0
        %626 = vmatpush.bf16.msra.mxu0 0
        %627 = vmatpush.bf16.msra.mxu0 0
        %628 = vmatpush.bf16.msra.mxu0 %v619
        %629 = vmatmul.bf16.gmra.mxu0 %v616
        %v630 = vpop.f32.mrf.mxu0
        %v631 = vadd.f32 0.0, %v630
        %v632 = vpop.f32.mrf.mxu0
        %633 = vdwg.mxu0
        %635 = vrot.lane.b32.xlu0 %v631, 16
        %v636 = vpop.permute.xlu0 %635
        %v638 = vsel %vm523, %v575, %v636
        %v639 = vpack.c.bf16 %v638, %v638
        %v640 = vperm.slane %v473, 0
        %v645 = vunpack.c.l.b16 %v469
        %v646 = vunpack.c.l.b16 %v470
        %v647 = vunpack.c.l.b16 %v471
        %v648 = vunpack.c.l.b16 %v472
        %v649 = vpack.c.b16 %v646, %v645
        %v650 = vpack.c.b16 %v648, %v647
        %v654 = vsel %vm430, %v639, 0
        %656 = vmatpush.bf16.msra.mxu0 0
        %657 = vmatpush.bf16.msra.mxu0 0
        %658 = vmatpush.bf16.msra.mxu0 0
        %659 = vmatpush.bf16.msra.mxu0 0
        %660 = vmatpush.bf16.msra.mxu0 0
        %661 = vmatpush.bf16.msra.mxu0 0
        %662 = vmatpush.bf16.msra.mxu0 %v650
        %663 = vmatpush.bf16.msra.mxu0 %v649
        %664 = vmatmul.bf16.gmra.mxu0 %v654
        %v665 = vpop.f32.mrf.mxu0
        %v666 = vadd.f32 %v640, %v665
        %v667 = vpop.f32.mrf.mxu0
        %668 = vdwg.mxu0
        %v669 = vadd.f32 %v666, %v463
        %v670 = vsel %vm430, %v669, 0.0
        %671 = vadd.xlane.f32.xlu0 %v670
        %v672 = vpop.xlane.xlu0 %671
        %v673 = vmul.f32 %v672, %v440
        %v674 = vsub.f32 %v669, %v673
        %v675 = vmul.f32 %v674, %v674
        %v676 = vsel %vm430, %v675, 0.0
        %677 = vadd.xlane.f32.xlu0 %v676
        %v678 = vpop.xlane.xlu0 %677
        %v679 = vmul.f32 %v678, %v440
        %v680 = vadd.f32 %v679, 1e-12
        %v681 = vrsqrt.pop %v680
        %v682 = vmul.f32 %v681, %v680
        %v683 = vmul.f32 %v682, %v681
        %v684 = vmul.f32 0.5, %v683
        %v685 = vsub.f32 1.5, %v684
        %v686 = vmul.f32 %v681, %v685
        %vm687 = vweird.f32 %v680
        %vm688 = vweird.f32 %v681
        %vm689 = vmor %vm687, %vm688
        %v690 = vsel %vm689, %v681, %v686
        %v691 = vmul.f32 %v674, %v690
        %v692 = vperm.slane %v473, 1
        %v693 = vmul.f32 %v691, %v692
        %v694 = vperm.slane %v473, 2
        %v695 = vadd.f32 %v693, %v694
        %v696 = vpack.c.bf16 %v695, %v695
        %v698 = vperm.slane %v486, 0
        %v704 = vunpack.c.l.b16 %v474
        %v705 = vunpack.c.l.b16 %v475
        %v706 = vunpack.c.l.b16 %v476
        %v707 = vunpack.c.l.b16 %v477
        %v708 = vpack.c.b16 %v705, %v704
        %v709 = vpack.c.b16 %v707, %v706
        %v713 = vsel %vm430, %v696, 0
        %715 = vmatpush.bf16.msra.mxu0 0
        %716 = vmatpush.bf16.msra.mxu0 0
        %717 = vmatpush.bf16.msra.mxu0 0
        %718 = vmatpush.bf16.msra.mxu0 0
        %719 = vmatpush.bf16.msra.mxu0 0
        %720 = vmatpush.bf16.msra.mxu0 0
        %721 = vmatpush.bf16.msra.mxu0 %v709
        %722 = vmatpush.bf16.msra.mxu0 %v708
        %723 = vmatmul.bf16.gmra.mxu0 %v713
        %v724 = vpop.f32.mrf.mxu0
        %v725 = vadd.f32 %v698, %v724
        %v726 = vpop.f32.mrf.mxu0
        %727 = vdwg.mxu0
        %v728 = vmul.f32 %v725, 0.5
        %v729 = vmul.f32 %v725, 0.044715
        %v730 = vmul.f32 %v729, %v725
        %v731 = vmul.f32 %v730, %v725
        %v732 = vadd.f32 %v725, %v731
        %v733 = vmul.f32 %v732, 0.7978846
        %v734 = vtanh.pop %v733
        %v735 = vadd.f32 %v734, 1.0
        %v736 = vmul.f32 %v728, %v735
        %v737 = vpack.c.bf16 %v736, %v736
        %v738 = vperm.slane %v473, 3
        %v747 = vunpack.c.l.b16 %v478
        %v748 = vunpack.c.l.b16 %v479
        %v749 = vunpack.c.l.b16 %v480
        %v750 = vunpack.c.l.b16 %v481
        %v751 = vunpack.c.l.b16 %v482
        %v752 = vunpack.c.l.b16 %v483
        %v753 = vunpack.c.l.b16 %v484
        %v754 = vunpack.c.l.b16 %v485
        %v755 = vpack.c.b16 %v748, %v747
        %v756 = vpack.c.b16 %v750, %v749
        %v757 = vpack.c.b16 %v752, %v751
        %v758 = vpack.c.b16 %v754, %v753
        %vm763 = vcmask 523264
        %v765 = vsel %vm763, %v737, 0
        %767 = vmatpush.bf16.msra.mxu0 0
        %768 = vmatpush.bf16.msra.mxu0 0
        %769 = vmatpush.bf16.msra.mxu0 0
        %770 = vmatpush.bf16.msra.mxu0 0
        %771 = vmatpush.bf16.msra.mxu0 %v758
        %772 = vmatpush.bf16.msra.mxu0 %v757
        %773 = vmatpush.bf16.msra.mxu0 %v756
        %774 = vmatpush.bf16.msra.mxu0 %v755
        %775 = vmatmul.bf16.gmra.mxu0 %v765
        %v776 = vpop.f32.mrf.mxu0
        %v777 = vadd.f32 %v738, %v776
        %v778 = vpop.f32.mrf.mxu0
        %779 = vdwg.mxu0
        %v780 = vadd.f32 %v777, %v695
        %v781 = vsel %vm430, %v780, 0.0
        %782 = vadd.xlane.f32.xlu0 %v781
        %v783 = vpop.xlane.xlu0 %782
        %v784 = vmul.f32 %v783, %v440
        %v785 = vsub.f32 %v780, %v784
        %v786 = vmul.f32 %v785, %v785
        %v787 = vsel %vm430, %v786, 0.0
        %788 = vadd.xlane.f32.xlu0 %v787
        %v789 = vpop.xlane.xlu0 %788
        %v790 = vmul.f32 %v789, %v440
        %v791 = vadd.f32 %v790, 1e-12
        %v792 = vrsqrt.pop %v791
        %v793 = vmul.f32 %v792, %v791
        %v794 = vmul.f32 %v793, %v792
        %v795 = vmul.f32 0.5, %v794
        %v796 = vsub.f32 1.5, %v795
        %v797 = vmul.f32 %v792, %v796
        %vm798 = vweird.f32 %v791
        %vm799 = vweird.f32 %v792
        %vm800 = vmor %vm798, %vm799
        %v801 = vsel %vm800, %v792, %v797
        %v802 = vmul.f32 %v785, %v801
        %v803 = vperm.slane %v473, 4
        %v804 = vmul.f32 %v802, %v803
        %v805 = vperm.slane %v473, 5
        %v806 = vadd.f32 %v804, %v805
        %s807 = scalar_lea.vmem %s3, 16
        %v808 = vld [vmem:[%s807] sm:$0xf]
        %v809 = vld [vmem:[%s807 + $0x4] sm:$0xf]
        %v810 = vld [vmem:[%s807 + $0x8] sm:$0xf]
        %v811 = vld [vmem:[%s807 + $0xc] sm:$0xf]
        %s812 = scalar_lea.vmem [#allocation7], 1
        %v813 = vld [vmem:[%s812] sm:$0x1]
        %s814 = scalar_lea.vmem %s5, 16
        %v815 = vld [vmem:[%s814] sm:$0xf]
        %v816 = vld [vmem:[%s814 + $0x4] sm:$0xf]
        %v817 = vld [vmem:[%s814 + $0x8] sm:$0xf]
        %v818 = vld [vmem:[%s814 + $0xc] sm:$0xf]
        %s819 = scalar_lea.vmem %s6, 8
        %v820 = vld [vmem:[%s819] sm:$0x3f]
        %s821 = scalar_lea.vmem %s7, 16
        %v822 = vld [vmem:[%s821] sm:$0xf]
        %v823 = vld [vmem:[%s821 + $0x4] sm:$0xf]
        %v824 = vld [vmem:[%s821 + $0x8] sm:$0xf]
        %v825 = vld [vmem:[%s821 + $0xc] sm:$0xf]
        %s826 = scalar_lea.vmem %s8, 32
        %v827 = vld [vmem:[%s826] sm:$0xf]
        %v828 = vld [vmem:[%s826 + $0x4] sm:$0xf]
        %v829 = vld [vmem:[%s826 + $0x8] sm:$0xf]
        %v830 = vld [vmem:[%s826 + $0xc] sm:$0xf]
        %v831 = vld [vmem:[%s826 + $0x10] sm:$0xf]
        %v832 = vld [vmem:[%s826 + $0x14] sm:$0xf]
        %v833 = vld [vmem:[%s826 + $0x18] sm:$0xf]
        %v834 = vld [vmem:[%s826 + $0x1c] sm:$0xf]
        %s835 = scalar_lea.vmem [#allocation8], 1
        %v836 = vld [vmem:[%s835] sm:$0x1]
        %v837 = vpack.c.bf16 %v806, %v806
        %v839 = vperm.slane %v813, 0
        %v845 = vunpack.c.l.b16 %v808
        %v846 = vunpack.c.l.b16 %v809
        %v847 = vunpack.c.l.b16 %v810
        %v848 = vunpack.c.l.b16 %v811
        %v849 = vpack.c.b16 %v846, %v845
        %v850 = vpack.c.b16 %v848, %v847
        %v854 = vsel %vm430, %v837, 0
        %856 = vmatpush.bf16.msra.mxu0 0
        %857 = vmatpush.bf16.msra.mxu0 0
        %858 = vmatpush.bf16.msra.mxu0 0
        %859 = vmatpush.bf16.msra.mxu0 0
        %860 = vmatpush.bf16.msra.mxu0 0
        %861 = vmatpush.bf16.msra.mxu0 0
        %862 = vmatpush.bf16.msra.mxu0 %v850
        %863 = vmatpush.bf16.msra.mxu0 %v849
        %864 = vmatmul.bf16.gmra.mxu0 %v854
        %v865 = vpop.f32.mrf.mxu0
        %v866 = vadd.f32 %v839, %v865
        %v867 = vpop.f32.mrf.mxu0
        %868 = vdwg.mxu0
        %v869 = vpack.c.bf16 %v866, %v866
        %871 = vrot.lane.b32.xlu0 %v869, 96
        %v872 = vpop.permute.xlu0 %871
        %v874 = vsel %vm523, %v869, 0
        %v877 = vsel %vm523, %v872, 0
        %879 = vmatpush.bf16.xpose.msra.mxu0 0
        %880 = vmatpush.bf16.xpose.msra.mxu0 0
        %881 = vmatpush.bf16.xpose.msra.mxu0 0
        %882 = vmatpush.bf16.xpose.msra.mxu0 0
        %883 = vmatpush.bf16.xpose.msra.mxu0 0
        %884 = vmatpush.bf16.xpose.msra.mxu0 0
        %885 = vmatpush.bf16.xpose.msra.mxu0 0
        %886 = vmatpush.bf16.xpose.msra.mxu0 %v877
        %887 = vmatmul.bf16.gmra.mxu0 %v874
        %v888 = vpop.f32.mrf.mxu0
        %v889 = vadd.f32 0.0, %v888
        %v890 = vpop.f32.mrf.mxu0
        %891 = vdwg.mxu0
        %v892 = vsel %vm543, %v889, -inf
        %893 = vmax.xlane.f32.xlu0 %v892
        %v894 = vpop.xlane.xlu0 %893
        %v895 = vsub.f32 %v889, %v894
        %v896 = vmul.f32 %v895, 1.442695
        %v897 = vpow.pop %v896
        %v898 = vsel %vm543, %v897, 0.0
        %899 = vadd.xlane.f32.xlu0 %v898
        %v900 = vpop.xlane.xlu0 %899
        %v901 = vrcp.pop %v900
        %v902 = vmul.f32 %v897, %v901
        %v903 = vpack.c.bf16 %v902, %v902
        %904 = vrot.lane.b32.xlu0 %v869, 64
        %v905 = vpop.permute.xlu0 %904
        %v907 = vsel %vm543, %v903, 0
        %v910 = vsel %vm561, %v905, 0
        %912 = vmatpush.bf16.msra.mxu0 0
        %913 = vmatpush.bf16.msra.mxu0 0
        %914 = vmatpush.bf16.msra.mxu0 0
        %915 = vmatpush.bf16.msra.mxu0 0
        %916 = vmatpush.bf16.msra.mxu0 0
        %917 = vmatpush.bf16.msra.mxu0 0
        %918 = vmatpush.bf16.msra.mxu0 0
        %919 = vmatpush.bf16.msra.mxu0 %v910
        %920 = vmatmul.bf16.gmra.mxu0 %v907
        %v921 = vpop.f32.mrf.mxu0
        %v922 = vadd.f32 0.0, %v921
        %v923 = vpop.f32.mrf.mxu0
        %924 = vdwg.mxu0
        %925 = vrot.lane.b32.xlu0 %v869, 112
        %v926 = vpop.permute.xlu0 %925
        %927 = vrot.lane.b32.xlu0 %v869, 80
        %v928 = vpop.permute.xlu0 %927
        %v930 = vsel %vm523, %v926, 0
        %v933 = vsel %vm523, %v928, 0
        %935 = vmatpush.bf16.xpose.msra.mxu0 0
        %936 = vmatpush.bf16.xpose.msra.mxu0 0
        %937 = vmatpush.bf16.xpose.msra.mxu0 0
        %938 = vmatpush.bf16.xpose.msra.mxu0 0
        %939 = vmatpush.bf16.xpose.msra.mxu0 0
        %940 = vmatpush.bf16.xpose.msra.mxu0 0
        %941 = vmatpush.bf16.xpose.msra.mxu0 0
        %942 = vmatpush.bf16.xpose.msra.mxu0 %v933
        %943 = vmatmul.bf16.gmra.mxu0 %v930
        %v944 = vpop.f32.mrf.mxu0
        %v945 = vadd.f32 0.0, %v944
        %v946 = vpop.f32.mrf.mxu0
        %947 = vdwg.mxu0
        %v948 = vsel %vm543, %v945, -inf
        %949 = vmax.xlane.f32.xlu0 %v948
        %v950 = vpop.xlane.xlu0 %949
        %v951 = vsub.f32 %v945, %v950
        %v952 = vmul.f32 %v951, 1.442695
        %v953 = vpow.pop %v952
        %v954 = vsel %vm543, %v953, 0.0
        %955 = vadd.xlane.f32.xlu0 %v954
        %v956 = vpop.xlane.xlu0 %955
        %v957 = vrcp.pop %v956
        %v958 = vmul.f32 %v953, %v957
        %v959 = vpack.c.bf16 %v958, %v958
        %960 = vrot.lane.b32.xlu0 %v869, 48
        %v961 = vpop.permute.xlu0 %960
        %v963 = vsel %vm543, %v959, 0
        %v966 = vsel %vm561, %v961, 0
        %968 = vmatpush.bf16.msra.mxu0 0
        %969 = vmatpush.bf16.msra.mxu0 0
        %970 = vmatpush.bf16.msra.mxu0 0
        %971 = vmatpush.bf16.msra.mxu0 0
        %972 = vmatpush.bf16.msra.mxu0 0
        %973 = vmatpush.bf16.msra.mxu0 0
        %974 = vmatpush.bf16.msra.mxu0 0
        %975 = vmatpush.bf16.msra.mxu0 %v966
        %976 = vmatmul.bf16.gmra.mxu0 %v963
        %v977 = vpop.f32.mrf.mxu0
        %v978 = vadd.f32 0.0, %v977
        %v979 = vpop.f32.mrf.mxu0
        %980 = vdwg.mxu0
        %982 = vrot.lane.b32.xlu0 %v978, 16
        %v983 = vpop.permute.xlu0 %982
        %v985 = vsel %vm523, %v922, %v983
        %v986 = vpack.c.bf16 %v985, %v985
        %v987 = vperm.slane %v820, 0
        %v992 = vunpack.c.l.b16 %v815
        %v993 = vunpack.c.l.b16 %v816
        %v994 = vunpack.c.l.b16 %v817
        %v995 = vunpack.c.l.b16 %v818
        %v996 = vpack.c.b16 %v993, %v992
        %v997 = vpack.c.b16 %v995, %v994
        %v1001 = vsel %vm430, %v986, 0
        %1003 = vmatpush.bf16.msra.mxu0 0
        %1004 = vmatpush.bf16.msra.mxu0 0
        %1005 = vmatpush.bf16.msra.mxu0 0
        %1006 = vmatpush.bf16.msra.mxu0 0
        %1007 = vmatpush.bf16.msra.mxu0 0
        %1008 = vmatpush.bf16.msra.mxu0 0
        %1009 = vmatpush.bf16.msra.mxu0 %v997
        %1010 = vmatpush.bf16.msra.mxu0 %v996
        %1011 = vmatmul.bf16.gmra.mxu0 %v1001
        %v1012 = vpop.f32.mrf.mxu0
        %v1013 = vadd.f32 %v987, %v1012
        %v1014 = vpop.f32.mrf.mxu0
        %1015 = vdwg.mxu0
        %v1016 = vadd.f32 %v1013, %v806
        %v1017 = vsel %vm430, %v1016, 0.0
        %1018 = vadd.xlane.f32.xlu0 %v1017
        %v1019 = vpop.xlane.xlu0 %1018
        %v1020 = vmul.f32 %v1019, %v440
        %v1021 = vsub.f32 %v1016, %v1020
        %v1022 = vmul.f32 %v1021, %v1021
        %v1023 = vsel %vm430, %v1022, 0.0
        %1024 = vadd.xlane.f32.xlu0 %v1023
        %v1025 = vpop.xlane.xlu0 %1024
        %v1026 = vmul.f32 %v1025, %v440
        %v1027 = vadd.f32 %v1026, 1e-12
        %v1028 = vrsqrt.pop %v1027
        %v1029 = vmul.f32 %v1028, %v1027
        %v1030 = vmul.f32 %v1029, %v1028
        %v1031 = vmul.f32 0.5, %v1030
        %v1032 = vsub.f32 1.5, %v1031
        %v1033 = vmul.f32 %v1028, %v1032
        %vm1034 = vweird.f32 %v1027
        %vm1035 = vweird.f32 %v1028
        %vm1036 = vmor %vm1034, %vm1035
        %v1037 = vsel %vm1036, %v1028, %v1033
        %v1038 = vmul.f32 %v1021, %v1037
        %v1039 = vperm.slane %v820, 1
        %v1040 = vmul.f32 %v1038, %v1039
        %v1041 = vperm.slane %v820, 2
        %v1042 = vadd.f32 %v1040, %v1041
        %v1043 = vpack.c.bf16 %v1042, %v1042
        %v1045 = vperm.slane %v836, 0
        %v1051 = vunpack.c.l.b16 %v822
        %v1052 = vunpack.c.l.b16 %v823
        %v1053 = vunpack.c.l.b16 %v824
        %v1054 = vunpack.c.l.b16 %v825
        %v1055 = vpack.c.b16 %v1052, %v1051
        %v1056 = vpack.c.b16 %v1054, %v1053
        %v1060 = vsel %vm430, %v1043, 0
        %1062 = vmatpush.bf16.msra.mxu0 0
        %1063 = vmatpush.bf16.msra.mxu0 0
        %1064 = vmatpush.bf16.msra.mxu0 0
        %1065 = vmatpush.bf16.msra.mxu0 0
        %1066 = vmatpush.bf16.msra.mxu0 0
        %1067 = vmatpush.bf16.msra.mxu0 0
        %1068 = vmatpush.bf16.msra.mxu0 %v1056
        %1069 = vmatpush.bf16.msra.mxu0 %v1055
        %1070 = vmatmul.bf16.gmra.mxu0 %v1060
        %v1071 = vpop.f32.mrf.mxu0
        %v1072 = vadd.f32 %v1045, %v1071
        %v1073 = vpop.f32.mrf.mxu0
        %1074 = vdwg.mxu0
        %v1075 = vmul.f32 %v1072, 0.5
        %v1076 = vmul.f32 %v1072, 0.044715
        %v1077 = vmul.f32 %v1076, %v1072
        %v1078 = vmul.f32 %v1077, %v1072
        %v1079 = vadd.f32 %v1072, %v1078
        %v1080 = vmul.f32 %v1079, 0.7978846
        %v1081 = vtanh.pop %v1080
        %v1082 = vadd.f32 %v1081, 1.0
        %v1083 = vmul.f32 %v1075, %v1082
        %v1084 = vpack.c.bf16 %v1083, %v1083
        %v1085 = vperm.slane %v820, 3
        %v1094 = vunpack.c.l.b16 %v827
        %v1095 = vunpack.c.l.b16 %v828
        %v1096 = vunpack.c.l.b16 %v829
        %v1097 = vunpack.c.l.b16 %v830
        %v1098 = vunpack.c.l.b16 %v831
        %v1099 = vunpack.c.l.b16 %v832
        %v1100 = vunpack.c.l.b16 %v833
        %v1101 = vunpack.c.l.b16 %v834
        %v1102 = vpack.c.b16 %v1095, %v1094
        %v1103 = vpack.c.b16 %v1097, %v1096
        %v1104 = vpack.c.b16 %v1099, %v1098
        %v1105 = vpack.c.b16 %v1101, %v1100
        %v1111 = vsel %vm763, %v1084, 0
        %1113 = vmatpush.bf16.msra.mxu0 0
        %1114 = vmatpush.bf16.msra.mxu0 0
        %1115 = vmatpush.bf16.msra.mxu0 0
        %1116 = vmatpush.bf16.msra.mxu0 0
        %1117 = vmatpush.bf16.msra.mxu0 %v1105
        %1118 = vmatpush.bf16.msra.mxu0 %v1104
        %1119 = vmatpush.bf16.msra.mxu0 %v1103
        %1120 = vmatpush.bf16.msra.mxu0 %v1102
        %1121 = vmatmul.bf16.gmra.mxu0 %v1111
        %v1122 = vpop.f32.mrf.mxu0
        %v1123 = vadd.f32 %v1085, %v1122
        %v1124 = vpop.f32.mrf.mxu0
        %1125 = vdwg.mxu0
        %v1126 = vadd.f32 %v1123, %v1042
        %v1127 = vsel %vm430, %v1126, 0.0
        %1128 = vadd.xlane.f32.xlu0 %v1127
        %v1129 = vpop.xlane.xlu0 %1128
        %v1130 = vmul.f32 %v1129, %v440
        %v1131 = vsub.f32 %v1126, %v1130
        %v1132 = vmul.f32 %v1131, %v1131
        %v1133 = vsel %vm430, %v1132, 0.0
        %1134 = vadd.xlane.f32.xlu0 %v1133
        %v1135 = vpop.xlane.xlu0 %1134
        %v1136 = vmul.f32 %v1135, %v440
        %v1137 = vadd.f32 %v1136, 1e-12
        %v1138 = vrsqrt.pop %v1137
        %v1139 = vmul.f32 %v1138, %v1137
        %v1140 = vmul.f32 %v1139, %v1138
        %v1141 = vmul.f32 0.5, %v1140
        %v1142 = vsub.f32 1.5, %v1141
        %v1143 = vmul.f32 %v1138, %v1142
        %vm1144 = vweird.f32 %v1137
        %vm1145 = vweird.f32 %v1138
        %vm1146 = vmor %vm1144, %vm1145
        %v1147 = vsel %vm1146, %v1138, %v1143
        %v1148 = vmul.f32 %v1131, %v1147
        %v1149 = vperm.slane %v820, 4
        %v1150 = vmul.f32 %v1148, %v1149
        %v1151 = vperm.slane %v820, 5
        %v1152 = vadd.f32 %v1150, %v1151
        %1153 = vst.msk [vmem:[%s424] sm:$0xff] %vm430, %v1152
        %s1154 = sand.u32 %s252, 1
        %s1155 = scalar_lea.sflag [#allocation4], %s1154
        %s1156 = sand.u32 %s252, 1
        %s1157 = smul.addr %s1156, 8
        %s1158 = scalar_lea.vmem [#allocation10], %s1157
        // Predicated region
        $region77: #{tpu_custom_call.1} parent=59 // pred_check
          %p1159 = pneg %p262
        $region78: #{tpu_custom_call.1} parent=59 // pred_check_branch
          %1161 = sbr.rel (%p1159) target = $region80
        $region79: #{tpu_custom_call.1} parent=59 // pred_region
          %1163 = vsyncadd %s1155, 0
          %s1164 = smul.addr %s29, 8
          %s1165 = scalar_lea.hbm %s10, %s1164
          %s1167 = sshll.u32 %s1158, 4
          %s1168 = int_to_ptr.vmem [resolvable:$true] %s1167
          %s1169 = sshll.u32 %s1165, 4
          %s1170 = int_to_ptr.hbm [resolvable:$true] %s1169
          %1172 = dma.vmem_to_hbm [thread:$0]  %s1168, 128, %s1170, %s1155
        $region80: #{tpu_custom_call.1} parent=59 // pred_fallthru
          _
      $region60: #{tpu_custom_call.1} parent=5 // pred_fallthru
        _
      %p1173 = scmp.le.s32.totalorder 2, %s24
      // Predicated region
      $region81: #{tpu_custom_call.1} parent=5 // pred_check
        %p1174 = pneg %p1173
      $region82: #{tpu_custom_call.1} parent=5 // pred_check_branch
        %1176 = sbr.rel (%p1174) target = $region84
      $region83: #{tpu_custom_call.1} parent=5 // pred_region
        %s1177 = ssub.s32 %s24, 2
        // Predicated region
        $region85: #{tpu_custom_call.1} parent=83 // pred_check
          %p1178 = pneg %p268
        $region86: #{tpu_custom_call.1} parent=83 // pred_check_branch
          %1180 = sbr.rel (%p1178) target = $region88
        $region87: #{tpu_custom_call.1} parent=83 // pred_region
          %s1181 = sand.u32 %s253, 1
          %s1182 = scalar_lea.sflag [#allocation4], %s1181
          %s1183 = sand.u32 %s253, 1
          %s1184 = smul.addr %s1183, 8
          %s1185 = scalar_lea.vmem [#allocation10], %s1184
          %1187 = dma.done %s1182, 128
        $region88: #{tpu_custom_call.1} parent=83 // pred_fallthru
          _
      $region84: #{tpu_custom_call.1} parent=5 // pred_fallthru
        _
    $region6: #{tpu_custom_call.1} parent=1 // loop_footer
      %s28 = sadd.s32 1, %s24
    $region7: #{tpu_custom_call.1} parent=1 // loop_footer_branch
      %23 = sbr.rel target = $region3
    $region8: #{tpu_custom_call.1} parent=1 // loop_exit
      _
    %1188 = vsyncpa [#allocation3], 1
    %s1189 = scalar_lea.sflag [#allocation3], 1
    %1190 = vsyncpa %s1189, 1
    %1191 = vsyncpa [#allocation6], 1
    %1192 = vsyncpa [#allocation9], 1
    %1193 = vsyncpa [#allocation4], 1
    %s1194 = scalar_lea.sflag [#allocation4], 1
    %1195 = vsyncpa %s1194, 1

</llo_original>
